<compile_context>
chip_gen: v7x
topology: tpu7x:2x2x1
jax: 0.10.0
libtpu: 0.0.40
codegen_flags: <defaults>
</compile_context>

<pallas_src>
import functools

import jax
import jax.numpy as jnp
from jax.experimental import pallas as pl
from jax.experimental.pallas import tpu as pltpu


def _round_up(x, m):
    return (x + m - 1) // m * m


def _vmem_params():
    """Generation-aware (tile-picker budget, scoped vmem limit) in bytes."""
    try:
        phys = int(pltpu.get_tpu_info().vmem_capacity_bytes)
    except Exception:
        phys = 64 * 1024 * 1024          # conservative default = v7x per-TC VMEM
    budget = min(phys // 4, 32 * 1024 * 1024)   # blocks the picker may use
    limit = min(phys // 2, 48 * 1024 * 1024)    # compiler scoped-VMEM limit
    return budget, limit


def _pick_row_tile(R, W, cin, cout, in_bytes, out_bytes,
                   target_pixels, vmem_budget_bytes):
    """Pick tR = number of (n, i) row-groups per grid step.

    Each step consumes tR*W input pixels and produces tR*2 NHWC output rows.
    Budget the double-buffered x/out blocks (padded to the (8,128) layout) plus
    the single-buffered weight slab, prefer divisors of R that keep the x block
    sublane-aligned, stay near `target_pixels` pixels/step, and keep >= 2 grid
    steps whenever R > 1 (so v7x megacore has work for both TensorCores).
    """
    lane, sub = 128, 8
    x_rg = W * max(_round_up(cin, lane), lane) * in_bytes
    o_rg = 2 * _round_up(W, sub) * max(_round_up(2 * cout, lane), lane) * out_bytes
    w_bytes = 2 * _round_up(cin, sub) * max(_round_up(2 * cout, lane), lane) * in_bytes
    b_bytes = sub * max(_round_up(2 * cout, lane), lane) * 4
    budget = max(vmem_budget_bytes - w_bytes - b_bytes, x_rg + o_rg)
    cap = max(1, min(budget // (2 * (x_rg + o_rg)),      # double-buffered x + out
                     max(1, target_pixels // W),
                     R))
    if R > 1:
        cap = min(cap, max(1, R // 2))                   # guarantee >= 2 grid steps
    cap = int(cap)
    # Prefer sublane-aligned tiles (the in-kernel reshape stays a layout no-op).
    for d in range(cap, 0, -1):
        if R % d == 0 and (d * W) % sub == 0:
            return d
    # Correct (but possibly copy-inducing) fallback; d=1 always divides R.
    for d in range(cap, 0, -1):
        if R % d == 0:
            return d
    return 1


def _upconv_kernel_2dot(x_ref, w_ref, b_ref, o_ref, *, tr, w, cout):
    # x_ref: (tr*w, Cin)   w_ref: (2, Cin, 2*Cout)   b_ref: (1, 2*Cout)
    # o_ref: (tr, 2, w, 2*Cout) — raw memory order == NHWC (rows 2i+kh, cols 2j+kw)
    x = x_ref[...]
    b = b_ref[...]                                  # hoisted out of the kh loop
    for kh in range(2):
        y = jnp.dot(x, w_ref[kh], preferred_element_type=jnp.float32)
        y = jnp.maximum(y + b, 0.0)
        # Leading-dim-only reshape (lane dim untouched); with (tr*w) % 8 == 0 it
        # is a pure layout no-op, so the store DMA lands contiguously in HBM.
        o_ref[:, kh, :, :] = y.reshape(tr, w, 2 * cout).astype(o_ref.dtype)


def _upconv_kernel_fused(x_ref, w_ref, b_ref, o_ref, *, tr, w, cout):
    # x_ref: (tr*w, Cin)   w_ref: (Cin, 4*Cout) lane order (kh, kw, co)
    # b_ref: (1, 4*Cout)   o_ref: (tr, 2, w, 2*Cout)
    # Single wide GEMM: better MXU N-dim fill, half the RHS pushes.  Only used
    # when 2*Cout % 128 == 0, so the lane slices below are at 128 boundaries.
    y = jnp.dot(x_ref[...], w_ref[...], preferred_element_type=jnp.float32)
    y = jnp.maximum(y + b_ref[...], 0.0)
    co2 = 2 * cout
    o_ref[:, 0, :, :] = y[:, :co2].reshape(tr, w, co2).astype(o_ref.dtype)
    o_ref[:, 1, :, :] = y[:, co2:].reshape(tr, w, co2).astype(o_ref.dtype)


def up_conv_block_nhwc(x_nhwc, weight, bias, *,
                       target_pixels_per_step=2048,
                       vmem_budget_bytes=None,
                       compute_dtype=None,
                       out_dtype=None):
    """ConvTranspose2d(k=2, s=2) + ReLU, NHWC in -> NHWC out (no transposes).

    x_nhwc: (N, H, W, Cin). weight: (Cin, Cout, 2, 2) (PyTorch layout). bias: (Cout,).
    Returns (N, 2H, 2W, Cout).

    Performance notes (the kernel is HBM-bandwidth-bound on v5e/v6e/v7x):
      * compute_dtype=jnp.bfloat16 halves input/weight HBM traffic with f32 MXU
        accumulation — recommended on ALL generations (bias+ReLU stay f32).
      * out_dtype=jnp.bfloat16 is the biggest lever: the 2H x 2W x Cout output
        dominates traffic.  Default stays the input dtype for PyTorch parity.
    """
    N, H, W, Cin = x_nhwc.shape
    Cout = weight.shape[1]
    out_dtype = out_dtype or x_nhwc.dtype
    cdt = compute_dtype or x_nhwc.dtype

    budget_default, vmem_limit = _vmem_params()
    budget = vmem_budget_bytes or budget_default
    target = max(target_pixels_per_step, 8 * W)

    R = N * H                                   # output row-groups (each -> 2 NHWC rows)
    tr = _pick_row_tile(R, W, Cin, Cout,
                        jnp.dtype(cdt).itemsize, jnp.dtype(out_dtype).itemsize,
                        target, budget)
    tm = tr * W                                 # input pixels per grid step
    grid = (R // tr,)

    # Pixel-major input view (free reshape of NHWC).
    x2d = x_nhwc.reshape(N * H * W, Cin).astype(cdt)

    fuse = (2 * Cout) % 128 == 0
    if fuse:
        # (Cin, 4*Cout) with lane order (kh, kw, co).
        w_slab = jnp.transpose(weight, (0, 2, 3, 1)).reshape(Cin, 4 * Cout).astype(cdt)
        b2 = jnp.tile(bias.astype(jnp.float32), 4).reshape(1, 4 * Cout)
        kernel = functools.partial(_upconv_kernel_fused, tr=tr, w=W, cout=Cout)
    else:
        # Per-kh slabs (2, Cin, 2*Cout) with lane order (kw, co).
        w_slab = jnp.transpose(weight, (2, 0, 3, 1)).reshape(2, Cin, 2 * Cout).astype(cdt)
        b2 = jnp.tile(bias.astype(jnp.float32), 2).reshape(1, 2 * Cout)
        kernel = functools.partial(_upconv_kernel_2dot, tr=tr, w=W, cout=Cout)

    in_bytes = jnp.dtype(cdt).itemsize
    out_bytes = jnp.dtype(out_dtype).itemsize
    cost = pl.CostEstimate(
        flops=2 * (N * H * W) * Cin * (4 * Cout),
        transcendentals=0,
        bytes_accessed=(N * H * W * Cin * in_bytes
                        + 4 * Cin * Cout * in_bytes
                        + 4 * Cout * 4
                        + N * H * W * 4 * Cout * out_bytes),
    )

    def _run(single_buffer_consts):
        pm = {"pipeline_mode": pl.Buffered(1)} if single_buffer_consts else {}
        if fuse:
            w_spec = pl.BlockSpec((Cin, 4 * Cout), lambda r: (0, 0), **pm)
            b_spec = pl.BlockSpec((1, 4 * Cout), lambda r: (0, 0), **pm)
        else:
            w_spec = pl.BlockSpec((2, Cin, 2 * Cout), lambda r: (0, 0, 0), **pm)
            b_spec = pl.BlockSpec((1, 2 * Cout), lambda r: (0, 0), **pm)
        return pl.pallas_call(
            kernel,
            out_shape=jax.ShapeDtypeStruct((R, 2, W, 2 * Cout), out_dtype),
            grid_spec=pltpu.PrefetchScalarGridSpec(
                num_scalar_prefetch=0,
                grid=grid,
                in_specs=[
                    pl.BlockSpec((tm, Cin), lambda r: (r, 0)),
                    w_spec,      # grid-invariant: single-buffered when supported
                    b_spec,
                ],
                out_specs=pl.BlockSpec((tr, 2, W, 2 * Cout), lambda r: (r, 0, 0, 0)),
            ),
            compiler_params=pltpu.CompilerParams(
                dimension_semantics=("parallel",),   # lets v7x shard steps over 2 TCs
                vmem_limit_bytes=int(vmem_limit),    # generation-aware scoped limit
            ),
            cost_estimate=cost,
        )(x2d, w_slab, b2)

    try:
        out = _run(True)
    except Exception:
        # Fallback if this jax/Mosaic version rejects Buffered(1): default
        # double-buffering is slightly more VMEM but identical results.
        out = _run(False)

    # (N*H, 2, W, 2*Cout) raw order is (n, i, kh, j, kw, co) == NHWC: free reshape.
    return out.reshape(N, 2 * H, 2 * W, Cout)


def up_conv_block(x, weight, bias, **kwargs):
    """PyTorch-parity wrapper: NCHW in -> NCHW out.

    WARNING: the two layout transposes below cost ~3x the kernel's own HBM
    traffic (the output transpose alone touches the 4x-sized output twice).
    In an NHWC model call `up_conv_block_nhwc` directly and both disappear.
    """
    x_nhwc = jnp.transpose(x, (0, 2, 3, 1))
    y_nhwc = up_conv_block_nhwc(x_nhwc, weight, bias, **kwargs)
    return jnp.transpose(y_nhwc, (0, 3, 1, 2))


def _reference(x, weight, bias):
    # Pure-JAX reference of ConvTranspose2d(k=2, s=2) + ReLU.
    N, Cin, H, W = x.shape
    Cout = weight.shape[1]
    y = jnp.einsum("ncij,cokl->noikjl", x, weight)           # (N,Cout,H,kh,W,kw)
    y = y.reshape(N, Cout, 2 * H, 2 * W) + bias[None, :, None, None]
    return jnp.maximum(y, 0.0)


if __name__ == "__main__":
    key = jax.random.PRNGKey(0)
    k_x, k_w, k_b = jax.random.split(key, 3)

    # Small demo shapes consistent with the module (two-dot path, Cout < 64).
    N, Cin, Cout, H, W = 2, 4, 8, 16, 16
    x = jax.random.normal(k_x, (N, Cin, H, W), dtype=jnp.float32)
    # ConvTranspose2d weight shape: (in_channels, out_channels, kH, kW)
    weight = jax.random.normal(k_w, (Cin, Cout, 2, 2), dtype=jnp.float32) * 0.1
    bias = jax.random.normal(k_b, (Cout,), dtype=jnp.float32) * 0.1

    ref = _reference(x, weight, bias)

    # f32 path: exact parity with the PyTorch module.
    out = jax.block_until_ready(up_conv_block(x, weight, bias))
    assert out.shape == (N, Cout, 2 * H, 2 * W)
    assert jnp.allclose(out, ref, atol=1e-5, rtol=1e-5)

    # bf16 compute + bf16 output — recommended bandwidth-bound config on all
    # generations (f32 MXU accumulation keeps error small).
    out_bf16 = jax.block_until_ready(
        up_conv_block(x, weight, bias,
                      compute_dtype=jnp.bfloat16, out_dtype=jnp.bfloat16))
    assert out_bf16.shape == (N, Cout, 2 * H, 2 * W)
    assert jnp.allclose(out_bf16.astype(jnp.float32), ref, atol=5e-2, rtol=5e-2)

    # Fused single-GEMM path (2*Cout % 128 == 0) exercised with Cout=64.
    N2, Cin2, Cout2, H2, W2 = 1, 8, 64, 8, 8
    x2 = jax.random.normal(k_x, (N2, Cin2, H2, W2), dtype=jnp.float32)
    w2 = jax.random.normal(k_w, (Cin2, Cout2, 2, 2), dtype=jnp.float32) * 0.1
    b2 = jax.random.normal(k_b, (Cout2,), dtype=jnp.float32) * 0.1
    ref2 = _reference(x2, w2, b2)
    out2 = jax.block_until_ready(up_conv_block(x2, w2, b2))
    assert out2.shape == (N2, Cout2, 2 * H2, 2 * W2)
    assert jnp.allclose(out2, ref2, atol=1e-5, rtol=1e-5)

    print("KERNEL_OK")
</pallas_src>

<mosaic_0001>
module attributes {stable_mosaic.version = 11 : i64} {
  func.func @_upconv_kernel_2dot(%arg0: i32, %arg1: memref<256x4xf32, #tpu.memory_space<vmem>>, %arg2: memref<2x4x16xf32, #tpu.memory_space<vmem>>, %arg3: memref<1x16xf32, #tpu.memory_space<vmem>>, %arg4: memref<16x2x16x16xf32, #tpu.memory_space<vmem>>) attributes {dimension_semantics = [#tpu.dimension_semantics<parallel>], iteration_bounds = array<i64: 2>, scalar_prefetch = 0 : i64, scratch_operands = 0 : i64, tpu.core_type = #tpu.core_type<tc>, window_params = [{transform_indices = @transform_0, window_bounds = array<i64: 256, 4>}, {pipeline_mode = #tpu.pipeline_mode<synchronous>, transform_indices = @transform_1, window_bounds = array<i64: 2, 4, 16>}, {pipeline_mode = #tpu.pipeline_mode<synchronous>, transform_indices = @transform_2, window_bounds = array<i64: 1, 16>}, {transform_indices = @transform_3, window_bounds = array<i64: 16, 2, 16, 16>}]} {
    %c0 = arith.constant 0 : index
    %c0_0 = arith.constant 0 : index
    %0 = vector.load %arg1[%c0, %c0_0] : memref<256x4xf32, #tpu.memory_space<vmem>>, vector<256x4xf32>
    %c0_1 = arith.constant 0 : index
    %c0_2 = arith.constant 0 : index
    %1 = vector.load %arg3[%c0_1, %c0_2] : memref<1x16xf32, #tpu.memory_space<vmem>>, vector<1x16xf32>
    %c0_3 = arith.constant 0 : index
    %c0_4 = arith.constant 0 : index
    %c0_5 = arith.constant 0 : index
    %2 = vector.load %arg2[%c0_3, %c0_4, %c0_5] : memref<2x4x16xf32, #tpu.memory_space<vmem>>, vector<1x4x16xf32>
    %3 = vector.shape_cast %2 : vector<1x4x16xf32> to vector<4x16xf32>
    %cst = arith.constant dense<0.000000e+00> : vector<256x16xf32>
    %4 = tpu.matmul %0, %3, %cst {dimension_numbers = #tpu.dot_dimension_numbers<[1], [0], [0], [1], [0, 0, 1, 1], [], []>} : vector<256x4xf32>, vector<4x16xf32>, vector<256x16xf32> -> vector<256x16xf32>
    %5 = vector.broadcast %1 : vector<1x16xf32> to vector<256x16xf32>
    %6 = arith.addf %4, %5 : vector<256x16xf32>
    %cst_6 = arith.constant 0.000000e+00 : f32
    %7 = vector.broadcast %cst_6 : f32 to vector<256x16xf32>
    %8 = arith.maximumf %6, %7 : vector<256x16xf32>
    %9 = vector.shape_cast %8 : vector<256x16xf32> to vector<16x16x16xf32>
    %c0_7 = arith.constant 0 : index
    %c0_8 = arith.constant 0 : index
    %c0_9 = arith.constant 0 : index
    %c0_10 = arith.constant 0 : index
    %10 = vector.load %arg4[%c0_7, %c0_8, %c0_9, %c0_10] : memref<16x2x16x16xf32, #tpu.memory_space<vmem>>, vector<16x1x16x16xf32>
    %11 = vector.shape_cast %10 : vector<16x1x16x16xf32> to vector<16x16x16xf32>
    %12 = vector.shape_cast %9 : vector<16x16x16xf32> to vector<16x1x16x16xf32>
    tpu.vector_store %arg4[%c0_7, %c0_8, %c0_9, %c0_10], %12 {strides = array<i32>} : memref<16x2x16x16xf32, #tpu.memory_space<vmem>>, vector<16x1x16x16xf32>,
    %c1 = arith.constant 1 : index
    %c0_11 = arith.constant 0 : index
    %c0_12 = arith.constant 0 : index
    %13 = vector.load %arg2[%c1, %c0_11, %c0_12] : memref<2x4x16xf32, #tpu.memory_space<vmem>>, vector<1x4x16xf32>
    %14 = vector.shape_cast %13 : vector<1x4x16xf32> to vector<4x16xf32>
    %cst_13 = arith.constant dense<0.000000e+00> : vector<256x16xf32>
    %15 = tpu.matmul %0, %14, %cst_13 {dimension_numbers = #tpu.dot_dimension_numbers<[1], [0], [0], [1], [0, 0, 1, 1], [], []>} : vector<256x4xf32>, vector<4x16xf32>, vector<256x16xf32> -> vector<256x16xf32>
    %16 = vector.broadcast %1 : vector<1x16xf32> to vector<256x16xf32>
    %17 = arith.addf %15, %16 : vector<256x16xf32>
    %cst_14 = arith.constant 0.000000e+00 : f32
    %18 = vector.broadcast %cst_14 : f32 to vector<256x16xf32>
    %19 = arith.maximumf %17, %18 : vector<256x16xf32>
    %20 = vector.shape_cast %19 : vector<256x16xf32> to vector<16x16x16xf32>
    %c0_15 = arith.constant 0 : index
    %c1_16 = arith.constant 1 : index
    %c0_17 = arith.constant 0 : index
    %c0_18 = arith.constant 0 : index
    %21 = vector.load %arg4[%c0_15, %c1_16, %c0_17, %c0_18] : memref<16x2x16x16xf32, #tpu.memory_space<vmem>>, vector<16x1x16x16xf32>
    %22 = vector.shape_cast %21 : vector<16x1x16x16xf32> to vector<16x16x16xf32>
    %23 = vector.shape_cast %20 : vector<16x16x16xf32> to vector<16x1x16x16xf32>
    tpu.vector_store %arg4[%c0_15, %c1_16, %c0_17, %c0_18], %23 {strides = array<i32>} : memref<16x2x16x16xf32, #tpu.memory_space<vmem>>, vector<16x1x16x16xf32>,
    return
  }
  func.func @transform_0(%arg0: i32) -> (i32, i32) {
    %c0_i32 = arith.constant 0 : i32
    %c0_i32_0 = arith.constant 0 : i32
    return %arg0, %c0_i32 : i32, i32
  }
  func.func @transform_1(%arg0: i32) -> (i32, i32, i32) {
    %c0_i32 = arith.constant 0 : i32
    %c0_i32_0 = arith.constant 0 : i32
    %c0_i32_1 = arith.constant 0 : i32
    %c0_i32_2 = arith.constant 0 : i32
    return %c0_i32, %c0_i32_0, %c0_i32_1 : i32, i32, i32
  }
  func.func @transform_2(%arg0: i32) -> (i32, i32) {
    %c0_i32 = arith.constant 0 : i32
    %c0_i32_0 = arith.constant 0 : i32
    %c0_i32_1 = arith.constant 0 : i32
    return %c0_i32, %c0_i32_0 : i32, i32
  }
  func.func @transform_3(%arg0: i32) -> (i32, i32, i32, i32) {
    %c0_i32 = arith.constant 0 : i32
    %c0_i32_0 = arith.constant 0 : i32
    %c0_i32_1 = arith.constant 0 : i32
    %c0_i32_2 = arith.constant 0 : i32
    return %arg0, %c0_i32, %c0_i32_0, %c0_i32_1 : i32, i32, i32, i32
  }
}

module attributes {stable_mosaic.version = 11 : i64} {
  func.func @_upconv_kernel_2dot(%arg0: i32, %arg1: memref<256x4xf32, #tpu.memory_space<vmem>>, %arg2: memref<2x4x16xf32, #tpu.memory_space<vmem>>, %arg3: memref<1x16xf32, #tpu.memory_space<vmem>>, %arg4: memref<16x2x16x16xf32, #tpu.memory_space<vmem>>) attributes {dimension_semantics = [#tpu.dimension_semantics<parallel>], iteration_bounds = array<i64: 2>, scalar_prefetch = 0 : i64, scratch_operands = 0 : i64, tpu.core_type = #tpu.core_type<tc>, window_params = [{transform_indices = @transform_0, window_bounds = array<i64: 256, 4>}, {pipeline_mode = #tpu.pipeline_mode<synchronous>, transform_indices = @transform_1, window_bounds = array<i64: 2, 4, 16>}, {pipeline_mode = #tpu.pipeline_mode<synchronous>, transform_indices = @transform_2, window_bounds = array<i64: 1, 16>}, {transform_indices = @transform_3, window_bounds = array<i64: 16, 2, 16, 16>}]} {
    %c0 = arith.constant 0 : index
    %c0_0 = arith.constant 0 : index
    %0 = vector.load %arg1[%c0, %c0_0] : memref<256x4xf32, #tpu.memory_space<vmem>>, vector<256x4xf32>
    %c0_1 = arith.constant 0 : index
    %c0_2 = arith.constant 0 : index
    %1 = vector.load %arg3[%c0_1, %c0_2] : memref<1x16xf32, #tpu.memory_space<vmem>>, vector<1x16xf32>
    %c0_3 = arith.constant 0 : index
    %c0_4 = arith.constant 0 : index
    %c0_5 = arith.constant 0 : index
    %2 = vector.load %arg2[%c0_3, %c0_4, %c0_5] : memref<2x4x16xf32, #tpu.memory_space<vmem>>, vector<1x4x16xf32>
    %3 = vector.shape_cast %2 : vector<1x4x16xf32> to vector<4x16xf32>
    %cst = arith.constant dense<0.000000e+00> : vector<256x16xf32>
    %4 = tpu.matmul %0, %3, %cst {dimension_numbers = #tpu.dot_dimension_numbers<[1], [0], [0], [1], [0, 0, 1, 1], [], []>} : vector<256x4xf32>, vector<4x16xf32>, vector<256x16xf32> -> vector<256x16xf32>
    %5 = vector.broadcast %1 : vector<1x16xf32> to vector<256x16xf32>
    %6 = arith.addf %4, %5 : vector<256x16xf32>
    %cst_6 = arith.constant 0.000000e+00 : f32
    %7 = vector.broadcast %cst_6 : f32 to vector<256x16xf32>
    %8 = arith.maximumf %6, %7 : vector<256x16xf32>
    %9 = vector.shape_cast %8 : vector<256x16xf32> to vector<16x16x16xf32>
    %c0_7 = arith.constant 0 : index
    %c0_8 = arith.constant 0 : index
    %c0_9 = arith.constant 0 : index
    %c0_10 = arith.constant 0 : index
    %10 = vector.load %arg4[%c0_7, %c0_8, %c0_9, %c0_10] : memref<16x2x16x16xf32, #tpu.memory_space<vmem>>, vector<16x1x16x16xf32>
    %11 = vector.shape_cast %10 : vector<16x1x16x16xf32> to vector<16x16x16xf32>
    %12 = vector.shape_cast %9 : vector<16x16x16xf32> to vector<16x1x16x16xf32>
    tpu.vector_store %arg4[%c0_7, %c0_8, %c0_9, %c0_10], %12 {strides = array<i32>} : memref<16x2x16x16xf32, #tpu.memory_space<vmem>>, vector<16x1x16x16xf32>,
    %c1 = arith.constant 1 : index
    %c0_11 = arith.constant 0 : index
    %c0_12 = arith.constant 0 : index
    %13 = vector.load %arg2[%c1, %c0_11, %c0_12] : memref<2x4x16xf32, #tpu.memory_space<vmem>>, vector<1x4x16xf32>
    %14 = vector.shape_cast %13 : vector<1x4x16xf32> to vector<4x16xf32>
    %cst_13 = arith.constant dense<0.000000e+00> : vector<256x16xf32>
    %15 = tpu.matmul %0, %14, %cst_13 {dimension_numbers = #tpu.dot_dimension_numbers<[1], [0], [0], [1], [0, 0, 1, 1], [], []>} : vector<256x4xf32>, vector<4x16xf32>, vector<256x16xf32> -> vector<256x16xf32>
    %16 = vector.broadcast %1 : vector<1x16xf32> to vector<256x16xf32>
    %17 = arith.addf %15, %16 : vector<256x16xf32>
    %cst_14 = arith.constant 0.000000e+00 : f32
    %18 = vector.broadcast %cst_14 : f32 to vector<256x16xf32>
    %19 = arith.maximumf %17, %18 : vector<256x16xf32>
    %20 = vector.shape_cast %19 : vector<256x16xf32> to vector<16x16x16xf32>
    %c0_15 = arith.constant 0 : index
    %c1_16 = arith.constant 1 : index
    %c0_17 = arith.constant 0 : index
    %c0_18 = arith.constant 0 : index
    %21 = vector.load %arg4[%c0_15, %c1_16, %c0_17, %c0_18] : memref<16x2x16x16xf32, #tpu.memory_space<vmem>>, vector<16x1x16x16xf32>
    %22 = vector.shape_cast %21 : vector<16x1x16x16xf32> to vector<16x16x16xf32>
    %23 = vector.shape_cast %20 : vector<16x16x16xf32> to vector<16x1x16x16xf32>
    tpu.vector_store %arg4[%c0_15, %c1_16, %c0_17, %c0_18], %23 {strides = array<i32>} : memref<16x2x16x16xf32, #tpu.memory_space<vmem>>, vector<16x1x16x16xf32>,
    return
  }
  func.func @transform_0(%arg0: i32) -> (i32, i32) {
    %c0_i32 = arith.constant 0 : i32
    %c0_i32_0 = arith.constant 0 : i32
    return %arg0, %c0_i32 : i32, i32
  }
  func.func @transform_1(%arg0: i32) -> (i32, i32, i32) {
    %c0_i32 = arith.constant 0 : i32
    %c0_i32_0 = arith.constant 0 : i32
    %c0_i32_1 = arith.constant 0 : i32
    %c0_i32_2 = arith.constant 0 : i32
    return %c0_i32, %c0_i32_0, %c0_i32_1 : i32, i32, i32
  }
  func.func @transform_2(%arg0: i32) -> (i32, i32) {
    %c0_i32 = arith.constant 0 : i32
    %c0_i32_0 = arith.constant 0 : i32
    %c0_i32_1 = arith.constant 0 : i32
    return %c0_i32, %c0_i32_0 : i32, i32
  }
  func.func @transform_3(%arg0: i32) -> (i32, i32, i32, i32) {
    %c0_i32 = arith.constant 0 : i32
    %c0_i32_0 = arith.constant 0 : i32
    %c0_i32_1 = arith.constant 0 : i32
    %c0_i32_2 = arith.constant 0 : i32
    return %arg0, %c0_i32, %c0_i32_0, %c0_i32_1 : i32, i32, i32, i32
  }
}

</mosaic_0001>

<llo_original>
// kernel: tpu_custom_call.1
$region0: #{tpu_custom_call.1}
  #allocation0 [shape = 'u32[]', space=smem, size = 0x4, offset = 0x4, fixed_abs, tag = 'smem constant byte address 0x4 - core index']
  #allocation1 [shape = 'u32[144,128]{1,0:T(1,128)}', space=vmem, size = 0x12000, scoped, tag = 'internal scratch']
  %s0 = inlined_call_operand.vmem [shape: f32[512,4], index: 0, kind: input, shape index: {}]
  %s1 = inlined_call_operand.vmem [shape: f32[2,4,16], index: 1, kind: input, shape index: {}]
  %s2 = inlined_call_operand.vmem [shape: f32[1,16], index: 2, kind: input, shape index: {}]
  %s3 = inlined_call_operand.vmem [shape: f32[32,2,16,16], index: 3, kind: output, shape index: {}]
  %s4 = sld [smem:[#allocation0]]
  $region45: #{tpu_custom_call.1} parent=0
    _
  %s6 = ssub.s32 1, %s4
  %s7 = scalar_select 0, %s6, %s4
  loop: start=0, step=1, limit=4
  $region2: #{tpu_custom_call.1} parent=0 // loop_pre_header
    _
  $region3: #{tpu_custom_call.1} parent=0 // loop_header
    %s9 = sphi 0, %s13
    %p10 = scmp.ge.s32.totalorder %s9, 4
    %s19 = sphi 0, %s21
    %s22 = sphi 0, %s19
    %s23 = sphi 0, %s22
    %s39 = sphi 0, %s23
    %s43 = sphi 0, %s43
    %s45 = sphi 0, %s43
    %s46 = sphi 0, %s45
    %s60 = sphi 0, %s46
    %s64 = sphi 0, %s64
    %s66 = sphi 0, %s64
    %s67 = sphi 0, %s66
    %s81 = sphi 0, %s67
    %s87 = sphi 0, %s89
    %s90 = sphi 0, %s87
    %s91 = sphi 0, %s90
    %s107 = sphi 0, %s91
  $region4: #{tpu_custom_call.1} parent=0 // loop_header_branch
    %12 = sbr.rel (%p10) target = $region8
  $region5: #{tpu_custom_call.1} parent=0 // loop_body
    %s14 = ssub.s32 %s9, 1
    %s15 = ssub.s32 %s9, 2
    %s16 = sadd.s32 %s9, 1
    %s17 = ssub.s32 %s9, %s16
    %p18 = scmp.eq.s32.totalorder %s17, 0
    %s20 = sadd.s32 %s19, 1
    %s21 = scalar_select %p18, %s19, %s20
    %p24 = pneg %p18
    %p25 = scmp.eq.s32.totalorder %s9, 1
    %p26 = por %p24, %p25
    %p27 = scmp.ne.s32.totalorder %s19, %s22
    %p28 = scmp.eq.s32.totalorder %s9, 0
    %p29 = por %p27, %p28
    %p30 = scmp.ne.s32.totalorder %s19, %s22
    %p31 = scmp.eq.s32.totalorder %s14, 1
    %p32 = por %p30, %p31
    %p33 = scmp.ne.s32.totalorder %s22, %s23
    %p34 = scmp.eq.s32.totalorder %s14, 0
    %p35 = por %p33, %p34
    %p36 = scmp.ne.s32.totalorder %s22, %s23
    %p37 = scmp.eq.s32.totalorder %s15, 1
    %p38 = por %p36, %p37
    %p40 = scmp.ne.s32.totalorder %s23, %s39
    %p41 = scmp.eq.s32.totalorder %s15, 0
    %p42 = por %p40, %p41
    %s44 = sadd.s32 %s43, 1
    %p47 = scmp.eq.s32.totalorder %s9, 1
    %p48 = scmp.ne.s32.totalorder %s43, %s45
    %p49 = scmp.eq.s32.totalorder %s9, 0
    %p50 = por %p48, %p49
    %p51 = scmp.ne.s32.totalorder %s43, %s45
    %p52 = scmp.eq.s32.totalorder %s14, 1
    %p53 = por %p51, %p52
    %p54 = scmp.ne.s32.totalorder %s45, %s46
    %p55 = scmp.eq.s32.totalorder %s14, 0
    %p56 = por %p54, %p55
    %p57 = scmp.ne.s32.totalorder %s45, %s46
    %p58 = scmp.eq.s32.totalorder %s15, 1
    %p59 = por %p57, %p58
    %p61 = scmp.ne.s32.totalorder %s46, %s60
    %p62 = scmp.eq.s32.totalorder %s15, 0
    %p63 = por %p61, %p62
    %s65 = sadd.s32 %s64, 1
    %p68 = scmp.eq.s32.totalorder %s9, 1
    %p69 = scmp.ne.s32.totalorder %s64, %s66
    %p70 = scmp.eq.s32.totalorder %s9, 0
    %p71 = por %p69, %p70
    %p72 = scmp.ne.s32.totalorder %s64, %s66
    %p73 = scmp.eq.s32.totalorder %s14, 1
    %p74 = por %p72, %p73
    %p75 = scmp.ne.s32.totalorder %s66, %s67
    %p76 = scmp.eq.s32.totalorder %s14, 0
    %p77 = por %p75, %p76
    %p78 = scmp.ne.s32.totalorder %s66, %s67
    %p79 = scmp.eq.s32.totalorder %s15, 1
    %p80 = por %p78, %p79
    %p82 = scmp.ne.s32.totalorder %s67, %s81
    %p83 = scmp.eq.s32.totalorder %s15, 0
    %p84 = por %p82, %p83
    %s85 = ssub.s32 %s9, %s16
    %p86 = scmp.eq.s32.totalorder %s85, 0
    %s88 = sadd.s32 %s87, 1
    %s89 = scalar_select %p86, %s87, %s88
    %p92 = pneg %p86
    %p93 = scmp.eq.s32.totalorder %s9, 1
    %p94 = por %p92, %p93
    %p95 = scmp.ne.s32.totalorder %s87, %s90
    %p96 = scmp.eq.s32.totalorder %s9, 0
    %p97 = por %p95, %p96
    %p98 = scmp.ne.s32.totalorder %s87, %s90
    %p99 = scmp.eq.s32.totalorder %s14, 1
    %p100 = por %p98, %p99
    %p101 = scmp.ne.s32.totalorder %s90, %s91
    %p102 = scmp.eq.s32.totalorder %s14, 0
    %p103 = por %p101, %p102
    %p104 = scmp.ne.s32.totalorder %s90, %s91
    %p105 = scmp.eq.s32.totalorder %s15, 1
    %p106 = por %p104, %p105
    %p108 = scmp.ne.s32.totalorder %s91, %s107
    %p109 = scmp.eq.s32.totalorder %s15, 0
    %p110 = por %p108, %p109
    %p111 = scmp.le.s32.totalorder 1, %s9
    %p112 = scmp.lt.s32.totalorder %s9, 3
    %p113 = pnand %p111, %p112
    %p114 = pneg %p113
    // Predicated region
    $region9: #{tpu_custom_call.1} parent=5 // pred_check
      _
    $region10: #{tpu_custom_call.1} parent=5 // pred_check_branch
      %116 = sbr.rel (%p113) target = $region12
    $region11: #{tpu_custom_call.1} parent=5 // pred_region
      %s117 = ssub.s32 %s9, 1
      // Predicated region
      $region13: #{tpu_custom_call.1} parent=11 // pred_check
        %p118 = pneg %p56
      $region14: #{tpu_custom_call.1} parent=11 // pred_check_branch
        %120 = sbr.rel (%p118) target = $region16
      $region15: #{tpu_custom_call.1} parent=11 // pred_region
        _
      $region16: #{tpu_custom_call.1} parent=11 // pred_fallthru
        _
      // Predicated region
      $region17: #{tpu_custom_call.1} parent=11 // pred_check
        %p121 = pneg %p77
      $region18: #{tpu_custom_call.1} parent=11 // pred_check_branch
        %123 = sbr.rel (%p121) target = $region20
      $region19: #{tpu_custom_call.1} parent=11 // pred_region
        _
      $region20: #{tpu_custom_call.1} parent=11 // pred_fallthru
        _
    $region12: #{tpu_custom_call.1} parent=5 // pred_fallthru
      _
    %p124 = scmp.lt.s32.totalorder %s9, 2
    // Predicated region
    $region21: #{tpu_custom_call.1} parent=5 // pred_check
      %p125 = pneg %p124
    $region22: #{tpu_custom_call.1} parent=5 // pred_check_branch
      %127 = sbr.rel (%p125) target = $region24
    $region23: #{tpu_custom_call.1} parent=5 // pred_region
      // Predicated region
      $region25: #{tpu_custom_call.1} parent=23 // pred_check
        %p128 = pneg %p29
      $region26: #{tpu_custom_call.1} parent=23 // pred_check_branch
        %130 = sbr.rel (%p128) target = $region28
      $region27: #{tpu_custom_call.1} parent=23 // pred_region
        %s131 = smul.u32 32, %s9
        %p132 = scmp.lt.s32.totalorder %s131, 63
        %s133 = scalar_select %p132, %s131, 63
        %s134 = smul.addr %s133, 8
        %s135 = scalar_lea.vmem %s0, %s134
        %s136 = smul.u32 32, %s9
      $region28: #{tpu_custom_call.1} parent=23 // pred_fallthru
        _
    $region24: #{tpu_custom_call.1} parent=5 // pred_fallthru
      _
    %p137 = scmp.le.s32.totalorder 1, %s9
    %p138 = scmp.lt.s32.totalorder %s9, 3
    %p139 = pnand %p137, %p138
    %p140 = pneg %p139
    // Predicated region
    $region29: #{tpu_custom_call.1} parent=5 // pred_check
      _
    $region30: #{tpu_custom_call.1} parent=5 // pred_check_branch
      %142 = sbr.rel (%p139) target = $region32
    $region31: #{tpu_custom_call.1} parent=5 // pred_region
      %s143 = ssub.s32 %s9, 1
      %s144 = smul.u32 32, %s14
      %p145 = scmp.lt.s32.totalorder %s144, 63
      %s146 = scalar_select %p145, %s144, 63
      %s147 = smul.addr %s146, 8
      %s148 = scalar_lea.vmem %s0, %s147
      %p149 = pneg %p35
      %p150 = pneg %p32
      %p151 = pneg %p56
      %p152 = pneg %p53
      %p153 = pneg %p77
      %p154 = pneg %p74
      %p155 = pneg %p103
      %p156 = pneg %p100
      %s157 = smul.u32 16, %s14
      %p158 = scmp.lt.s32.totalorder %s157, 31
      %s159 = scalar_select %p158, %s157, 31
      %s160 = smul.addr %s159, 4
      %s161 = smul.addr %s160, 8
      %s162 = scalar_lea.vmem %s3, %s161
      %s163 = smul.u32 32, %s14
      %p164 = scmp.lt.s32.totalorder %s163, 63
      %s165 = scalar_select %p164, %s163, 63
      %s166 = smul.addr %s165, 8
      %s167 = scalar_lea.vmem %s0, %s166
      %s168 = smul.u32 32, %s14
      %s169 = smul.u32 16, %s14
      %p170 = scmp.lt.s32.totalorder %s169, 31
      %s171 = scalar_select %p170, %s169, 31
      %s172 = smul.addr %s171, 4
      %s173 = smul.addr %s172, 8
      %s174 = scalar_lea.vmem %s3, %s173
      %s175 = smul.u32 16, %s14
      %v176 = vld [vmem:[%s167] sm:$0xff]
      %v177 = vld [vmem:[%s167 + $0x8] sm:$0xff]
      %v178 = vld [vmem:[%s167 + $0x10] sm:$0xff]
      %v179 = vld [vmem:[%s167 + $0x18] sm:$0xff]
      %v180 = vld [vmem:[%s167 + $0x20] sm:$0xff]
      %v181 = vld [vmem:[%s167 + $0x28] sm:$0xff]
      %v182 = vld [vmem:[%s167 + $0x30] sm:$0xff]
      %v183 = vld [vmem:[%s167 + $0x38] sm:$0xff]
      %v184 = vld [vmem:[%s167 + $0x40] sm:$0xff]
      %v185 = vld [vmem:[%s167 + $0x48] sm:$0xff]
      %v186 = vld [vmem:[%s167 + $0x50] sm:$0xff]
      %v187 = vld [vmem:[%s167 + $0x58] sm:$0xff]
      %v188 = vld [vmem:[%s167 + $0x60] sm:$0xff]
      %v189 = vld [vmem:[%s167 + $0x68] sm:$0xff]
      %v190 = vld [vmem:[%s167 + $0x70] sm:$0xff]
      %v191 = vld [vmem:[%s167 + $0x78] sm:$0xff]
      %v192 = vld [vmem:[%s167 + $0x80] sm:$0xff]
      %v193 = vld [vmem:[%s167 + $0x88] sm:$0xff]
      %v194 = vld [vmem:[%s167 + $0x90] sm:$0xff]
      %v195 = vld [vmem:[%s167 + $0x98] sm:$0xff]
      %v196 = vld [vmem:[%s167 + $0xa0] sm:$0xff]
      %v197 = vld [vmem:[%s167 + $0xa8] sm:$0xff]
      %v198 = vld [vmem:[%s167 + $0xb0] sm:$0xff]
      %v199 = vld [vmem:[%s167 + $0xb8] sm:$0xff]
      %v200 = vld [vmem:[%s167 + $0xc0] sm:$0xff]
      %v201 = vld [vmem:[%s167 + $0xc8] sm:$0xff]
      %v202 = vld [vmem:[%s167 + $0xd0] sm:$0xff]
      %v203 = vld [vmem:[%s167 + $0xd8] sm:$0xff]
      %v204 = vld [vmem:[%s167 + $0xe0] sm:$0xff]
      %v205 = vld [vmem:[%s167 + $0xe8] sm:$0xff]
      %v206 = vld [vmem:[%s167 + $0xf0] sm:$0xff]
      %v207 = vld [vmem:[%s167 + $0xf8] sm:$0xff]
      %v208 = vld [vmem:[%s2] sm:$0x1]
      %v209 = vld [vmem:[%s1] sm:$0xf]
      %v211 = vlaneseq
      %v212 = vshrl.u32 %v211, 7
      %v213 = vsub.s32 0, %v212
      %v214 = vrot.slane %v208, %v213
      %vm216 = vcmask 31744
      %v218 = vsel %vm216, %v176, 0
      %v221 = vsel %vm216, %v177, 0
      %v224 = vsel %vm216, %v178, 0
      %v227 = vsel %vm216, %v179, 0
      %v230 = vsel %vm216, %v180, 0
      %v233 = vsel %vm216, %v181, 0
      %v236 = vsel %vm216, %v182, 0
      %v239 = vsel %vm216, %v183, 0
      %v242 = vsel %vm216, %v184, 0
      %v245 = vsel %vm216, %v185, 0
      %v248 = vsel %vm216, %v186, 0
      %v251 = vsel %vm216, %v187, 0
      %v254 = vsel %vm216, %v188, 0
      %v257 = vsel %vm216, %v189, 0
      %v260 = vsel %vm216, %v190, 0
      %v263 = vsel %vm216, %v191, 0
      %v266 = vsel %vm216, %v192, 0
      %v269 = vsel %vm216, %v193, 0
      %v272 = vsel %vm216, %v194, 0
      %v275 = vsel %vm216, %v195, 0
      %v278 = vsel %vm216, %v196, 0
      %v281 = vsel %vm216, %v197, 0
      %v284 = vsel %vm216, %v198, 0
      %v287 = vsel %vm216, %v199, 0
      %v290 = vsel %vm216, %v200, 0
      %v293 = vsel %vm216, %v201, 0
      %v296 = vsel %vm216, %v202, 0
      %v299 = vsel %vm216, %v203, 0
      %v302 = vsel %vm216, %v204, 0
      %v305 = vsel %vm216, %v205, 0
      %v308 = vsel %vm216, %v206, 0
      %v311 = vsel %vm216, %v207, 0
      %vm313 = vcmask 1043456
      %v315 = vsel %vm313, %v209, 0
      %317 = vmatprep.subr.mxu0 0.0
      %318 = vmatpush1.msra.mxu0 %v315
      %319 = vmatprep.subr.mxu0 0.0
      %320 = vmatpush1.msra.mxu0 0.0
      %321 = vmatprep.subr.mxu0 0.0
      %322 = vmatpush1.msra.mxu0 0.0
      %323 = vmatprep.subr.mxu0 0.0
      %324 = vmatpush1.msra.mxu0 0.0
      %325 = vmatprep.subr.mxu0 0.0
      %326 = vmatpush1.msra.mxu0 0.0
      %327 = vmatprep.subr.mxu0 0.0
      %328 = vmatpush1.msra.mxu0 0.0
      %329 = vmatprep.subr.mxu0 0.0
      %330 = vmatpush1.msra.mxu0 0.0
      %331 = vmatprep.subr.mxu0 0.0
      %332 = vmatpush1.msra.mxu0 0.0
      %333 = vmatprep.subr.mxu0 0.0
      %334 = vmatpush1.msra.mxu0 0.0
      %335 = vmatprep.subr.mxu0 0.0
      %336 = vmatpush1.msra.mxu0 0.0
      %337 = vmatprep.subr.mxu0 0.0
      %338 = vmatpush1.msra.mxu0 0.0
      %339 = vmatprep.subr.mxu0 0.0
      %340 = vmatpush1.msra.mxu0 0.0
      %341 = vmatprep.subr.mxu0 0.0
      %342 = vmatpush1.msra.mxu0 0.0
      %343 = vmatprep.subr.mxu0 0.0
      %344 = vmatpush1.msra.mxu0 0.0
      %345 = vmatprep.subr.mxu0 0.0
      %346 = vmatpush1.msra.mxu0 0.0
      %347 = vmatprep.subr.mxu0 0.0
      %348 = vmatpush1.msra.mxu0 0.0
      %349 = vmatprep.subr.mxu0 0.0
      %350 = vmatpush1.msra.mxu0 0.0
      %351 = vmatprep.subr.mxu0 0.0
      %352 = vmatpush1.msra.mxu0 0.0
      %353 = vmatprep.subr.mxu0 0.0
      %354 = vmatpush1.msra.mxu0 0.0
      %355 = vmatprep.subr.mxu0 0.0
      %356 = vmatpush1.msra.mxu0 0.0
      %357 = vmatprep.subr.mxu0 0.0
      %358 = vmatpush1.msra.mxu0 0.0
      %359 = vmatprep.subr.mxu0 0.0
      %360 = vmatpush1.msra.mxu0 0.0
      %361 = vmatprep.subr.mxu0 0.0
      %362 = vmatpush1.msra.mxu0 0.0
      %363 = vmatprep.subr.mxu0 0.0
      %364 = vmatpush1.msra.mxu0 0.0
      %365 = vmatprep.subr.mxu0 0.0
      %366 = vmatpush1.msra.mxu0 0.0
      %367 = vmatprep.subr.mxu0 0.0
      %368 = vmatpush1.msra.mxu0 0.0
      %369 = vmatprep.subr.mxu0 0.0
      %370 = vmatpush1.msra.mxu0 0.0
      %371 = vmatprep.subr.mxu0 0.0
      %372 = vmatpush1.msra.mxu0 0.0
      %373 = vmatprep.subr.mxu0 0.0
      %374 = vmatpush1.msra.mxu0 0.0
      %375 = vmatprep.subr.mxu0 0.0
      %376 = vmatpush1.msra.mxu0 0.0
      %377 = vmatprep.subr.mxu0 0.0
      %378 = vmatpush1.msra.mxu0 0.0
      %379 = vmatprep.subr.mxu0 0.0
      %380 = vmatpush1.msra.mxu0 0.0
      %381 = vmatprep.mubr.f32.mxu0 0.0
      %382 = vmatmul.mubr.f32.gmra.mrb[0].mxu0 %v218
      %v383 = vpop.f32.mrb[0].mxu0
      %v384 = vadd.f32 %v214, %v383
      %v385 = vpop.f32.mrb[0].mxu0
      %386 = vmatprep.mubr.f32.mxu0 0.0
      %387 = vmatmul.mubr.f32.gmra.mrb[0].mxu0 %v221
      %v388 = vpop.f32.mrb[0].mxu0
      %v389 = vadd.f32 %v214, %v388
      %v390 = vpop.f32.mrb[0].mxu0
      %391 = vmatprep.mubr.f32.mxu0 0.0
      %392 = vmatmul.mubr.f32.gmra.mrb[0].mxu0 %v224
      %v393 = vpop.f32.mrb[0].mxu0
      %v394 = vadd.f32 %v214, %v393
      %v395 = vpop.f32.mrb[0].mxu0
      %396 = vmatprep.mubr.f32.mxu0 0.0
      %397 = vmatmul.mubr.f32.gmra.mrb[0].mxu0 %v227
      %v398 = vpop.f32.mrb[0].mxu0
      %v399 = vadd.f32 %v214, %v398
      %v400 = vpop.f32.mrb[0].mxu0
      %401 = vmatprep.mubr.f32.mxu0 0.0
      %402 = vmatmul.mubr.f32.gmra.mrb[0].mxu0 %v230
      %v403 = vpop.f32.mrb[0].mxu0
      %v404 = vadd.f32 %v214, %v403
      %v405 = vpop.f32.mrb[0].mxu0
      %406 = vmatprep.mubr.f32.mxu0 0.0
      %407 = vmatmul.mubr.f32.gmra.mrb[0].mxu0 %v233
      %v408 = vpop.f32.mrb[0].mxu0
      %v409 = vadd.f32 %v214, %v408
      %v410 = vpop.f32.mrb[0].mxu0
      %411 = vmatprep.mubr.f32.mxu0 0.0
      %412 = vmatmul.mubr.f32.gmra.mrb[0].mxu0 %v236
      %v413 = vpop.f32.mrb[0].mxu0
      %v414 = vadd.f32 %v214, %v413
      %v415 = vpop.f32.mrb[0].mxu0
      %416 = vmatprep.mubr.f32.mxu0 0.0
      %417 = vmatmul.mubr.f32.gmra.mrb[0].mxu0 %v239
      %v418 = vpop.f32.mrb[0].mxu0
      %v419 = vadd.f32 %v214, %v418
      %v420 = vpop.f32.mrb[0].mxu0
      %421 = vmatprep.mubr.f32.mxu0 0.0
      %422 = vmatmul.mubr.f32.gmra.mrb[0].mxu0 %v242
      %v423 = vpop.f32.mrb[0].mxu0
      %v424 = vadd.f32 %v214, %v423
      %v425 = vpop.f32.mrb[0].mxu0
      %426 = vmatprep.mubr.f32.mxu0 0.0
      %427 = vmatmul.mubr.f32.gmra.mrb[0].mxu0 %v245
      %v428 = vpop.f32.mrb[0].mxu0
      %v429 = vadd.f32 %v214, %v428
      %v430 = vpop.f32.mrb[0].mxu0
      %431 = vmatprep.mubr.f32.mxu0 0.0
      %432 = vmatmul.mubr.f32.gmra.mrb[0].mxu0 %v248
      %v433 = vpop.f32.mrb[0].mxu0
      %v434 = vadd.f32 %v214, %v433
      %v435 = vpop.f32.mrb[0].mxu0
      %436 = vmatprep.mubr.f32.mxu0 0.0
      %437 = vmatmul.mubr.f32.gmra.mrb[0].mxu0 %v251
      %v438 = vpop.f32.mrb[0].mxu0
      %v439 = vadd.f32 %v214, %v438
      %v440 = vpop.f32.mrb[0].mxu0
      %441 = vmatprep.mubr.f32.mxu0 0.0
      %442 = vmatmul.mubr.f32.gmra.mrb[0].mxu0 %v254
      %v443 = vpop.f32.mrb[0].mxu0
      %v444 = vadd.f32 %v214, %v443
      %v445 = vpop.f32.mrb[0].mxu0
      %446 = vmatprep.mubr.f32.mxu0 0.0
      %447 = vmatmul.mubr.f32.gmra.mrb[0].mxu0 %v257
      %v448 = vpop.f32.mrb[0].mxu0
      %v449 = vadd.f32 %v214, %v448
      %v450 = vpop.f32.mrb[0].mxu0
      %451 = vmatprep.mubr.f32.mxu0 0.0
      %452 = vmatmul.mubr.f32.gmra.mrb[0].mxu0 %v260
      %v453 = vpop.f32.mrb[0].mxu0
      %v454 = vadd.f32 %v214, %v453
      %v455 = vpop.f32.mrb[0].mxu0
      %456 = vmatprep.mubr.f32.mxu0 0.0
      %457 = vmatmul.mubr.f32.gmra.mrb[0].mxu0 %v263
      %v458 = vpop.f32.mrb[0].mxu0
      %v459 = vadd.f32 %v214, %v458
      %v460 = vpop.f32.mrb[0].mxu0
      %461 = vmatprep.mubr.f32.mxu0 0.0
      %462 = vmatmul.mubr.f32.gmra.mrb[0].mxu0 %v266
      %v463 = vpop.f32.mrb[0].mxu0
      %v464 = vadd.f32 %v214, %v463
      %v465 = vpop.f32.mrb[0].mxu0
      %466 = vmatprep.mubr.f32.mxu0 0.0
      %467 = vmatmul.mubr.f32.gmra.mrb[0].mxu0 %v269
      %v468 = vpop.f32.mrb[0].mxu0
      %v469 = vadd.f32 %v214, %v468
      %v470 = vpop.f32.mrb[0].mxu0
      %471 = vmatprep.mubr.f32.mxu0 0.0
      %472 = vmatmul.mubr.f32.gmra.mrb[0].mxu0 %v272
      %v473 = vpop.f32.mrb[0].mxu0
      %v474 = vadd.f32 %v214, %v473
      %v475 = vpop.f32.mrb[0].mxu0
      %476 = vmatprep.mubr.f32.mxu0 0.0
      %477 = vmatmul.mubr.f32.gmra.mrb[0].mxu0 %v275
      %v478 = vpop.f32.mrb[0].mxu0
      %v479 = vadd.f32 %v214, %v478
      %v480 = vpop.f32.mrb[0].mxu0
      %481 = vmatprep.mubr.f32.mxu0 0.0
      %482 = vmatmul.mubr.f32.gmra.mrb[0].mxu0 %v278
      %v483 = vpop.f32.mrb[0].mxu0
      %v484 = vadd.f32 %v214, %v483
      %v485 = vpop.f32.mrb[0].mxu0
      %486 = vmatprep.mubr.f32.mxu0 0.0
      %487 = vmatmul.mubr.f32.gmra.mrb[0].mxu0 %v281
      %v488 = vpop.f32.mrb[0].mxu0
      %v489 = vadd.f32 %v214, %v488
      %v490 = vpop.f32.mrb[0].mxu0
      %491 = vmatprep.mubr.f32.mxu0 0.0
      %492 = vmatmul.mubr.f32.gmra.mrb[0].mxu0 %v284
      %v493 = vpop.f32.mrb[0].mxu0
      %v494 = vadd.f32 %v214, %v493
      %v495 = vpop.f32.mrb[0].mxu0
      %496 = vmatprep.mubr.f32.mxu0 0.0
      %497 = vmatmul.mubr.f32.gmra.mrb[0].mxu0 %v287
      %v498 = vpop.f32.mrb[0].mxu0
      %v499 = vadd.f32 %v214, %v498
      %v500 = vpop.f32.mrb[0].mxu0
      %501 = vmatprep.mubr.f32.mxu0 0.0
      %502 = vmatmul.mubr.f32.gmra.mrb[0].mxu0 %v290
      %v503 = vpop.f32.mrb[0].mxu0
      %v504 = vadd.f32 %v214, %v503
      %v505 = vpop.f32.mrb[0].mxu0
      %506 = vmatprep.mubr.f32.mxu0 0.0
      %507 = vmatmul.mubr.f32.gmra.mrb[0].mxu0 %v293
      %v508 = vpop.f32.mrb[0].mxu0
      %v509 = vadd.f32 %v214, %v508
      %v510 = vpop.f32.mrb[0].mxu0
      %511 = vmatprep.mubr.f32.mxu0 0.0
      %512 = vmatmul.mubr.f32.gmra.mrb[0].mxu0 %v296
      %v513 = vpop.f32.mrb[0].mxu0
      %v514 = vadd.f32 %v214, %v513
      %v515 = vpop.f32.mrb[0].mxu0
      %516 = vmatprep.mubr.f32.mxu0 0.0
      %517 = vmatmul.mubr.f32.gmra.mrb[0].mxu0 %v299
      %v518 = vpop.f32.mrb[0].mxu0
      %v519 = vadd.f32 %v214, %v518
      %v520 = vpop.f32.mrb[0].mxu0
      %521 = vmatprep.mubr.f32.mxu0 0.0
      %522 = vmatmul.mubr.f32.gmra.mrb[0].mxu0 %v302
      %v523 = vpop.f32.mrb[0].mxu0
      %v524 = vadd.f32 %v214, %v523
      %v525 = vpop.f32.mrb[0].mxu0
      %526 = vmatprep.mubr.f32.mxu0 0.0
      %527 = vmatmul.mubr.f32.gmra.mrb[0].mxu0 %v305
      %v528 = vpop.f32.mrb[0].mxu0
      %v529 = vadd.f32 %v214, %v528
      %v530 = vpop.f32.mrb[0].mxu0
      %531 = vmatprep.mubr.f32.mxu0 0.0
      %532 = vmatmul.mubr.f32.gmra.mrb[0].mxu0 %v308
      %v533 = vpop.f32.mrb[0].mxu0
      %v534 = vadd.f32 %v214, %v533
      %v535 = vpop.f32.mrb[0].mxu0
      %536 = vmatprep.mubr.f32.mxu0 0.0
      %537 = vmatmul.mubr.f32.gmra.mrb[0].mxu0 %v311
      %v538 = vpop.f32.mrb[0].mxu0
      %v539 = vadd.f32 %v214, %v538
      %v540 = vpop.f32.mrb[0].mxu0
      %541 = vdwg.mxu0
      %v542 = vmax.f32 %v384, 0.0
      %v543 = vmax.f32 %v389, 0.0
      %v544 = vmax.f32 %v394, 0.0
      %v545 = vmax.f32 %v399, 0.0
      %v546 = vmax.f32 %v404, 0.0
      %v547 = vmax.f32 %v409, 0.0
      %v548 = vmax.f32 %v414, 0.0
      %v549 = vmax.f32 %v419, 0.0
      %v550 = vmax.f32 %v424, 0.0
      %v551 = vmax.f32 %v429, 0.0
      %v552 = vmax.f32 %v434, 0.0
      %v553 = vmax.f32 %v439, 0.0
      %v554 = vmax.f32 %v444, 0.0
      %v555 = vmax.f32 %v449, 0.0
      %v556 = vmax.f32 %v454, 0.0
      %v557 = vmax.f32 %v459, 0.0
      %v558 = vmax.f32 %v464, 0.0
      %v559 = vmax.f32 %v469, 0.0
      %v560 = vmax.f32 %v474, 0.0
      %v561 = vmax.f32 %v479, 0.0
      %v562 = vmax.f32 %v484, 0.0
      %v563 = vmax.f32 %v489, 0.0
      %v564 = vmax.f32 %v494, 0.0
      %v565 = vmax.f32 %v499, 0.0
      %v566 = vmax.f32 %v504, 0.0
      %v567 = vmax.f32 %v509, 0.0
      %v568 = vmax.f32 %v514, 0.0
      %v569 = vmax.f32 %v519, 0.0
      %v570 = vmax.f32 %v524, 0.0
      %v571 = vmax.f32 %v529, 0.0
      %v572 = vmax.f32 %v534, 0.0
      %v573 = vmax.f32 %v539, 0.0
      %vm574 = vcmask 130048
      %575 = vst.msk [vmem:[%s174] sm:$0xff] %vm574, %v542
      %576 = vst.msk [vmem:[%s174 + $0x8] sm:$0xff] %vm574, %v543
      %577 = vst.msk [vmem:[%s174 + $0x20] sm:$0xff] %vm574, %v544
      %578 = vst.msk [vmem:[%s174 + $0x28] sm:$0xff] %vm574, %v545
      %579 = vst.msk [vmem:[%s174 + $0x40] sm:$0xff] %vm574, %v546
      %580 = vst.msk [vmem:[%s174 + $0x48] sm:$0xff] %vm574, %v547
      %581 = vst.msk [vmem:[%s174 + $0x60] sm:$0xff] %vm574, %v548
      %582 = vst.msk [vmem:[%s174 + $0x68] sm:$0xff] %vm574, %v549
      %583 = vst.msk [vmem:[%s174 + $0x80] sm:$0xff] %vm574, %v550
      %584 = vst.msk [vmem:[%s174 + $0x88] sm:$0xff] %vm574, %v551
      %585 = vst.msk [vmem:[%s174 + $0xa0] sm:$0xff] %vm574, %v552
      %586 = vst.msk [vmem:[%s174 + $0xa8] sm:$0xff] %vm574, %v553
      %587 = vst.msk [vmem:[%s174 + $0xc0] sm:$0xff] %vm574, %v554
      %588 = vst.msk [vmem:[%s174 + $0xc8] sm:$0xff] %vm574, %v555
      %589 = vst.msk [vmem:[%s174 + $0xe0] sm:$0xff] %vm574, %v556
      %590 = vst.msk [vmem:[%s174 + $0xe8] sm:$0xff] %vm574, %v557
      %591 = vst.msk [vmem:[%s174 + $0x100] sm:$0xff] %vm574, %v558
      %592 = vst.msk [vmem:[%s174 + $0x108] sm:$0xff] %vm574, %v559
      %593 = vst.msk [vmem:[%s174 + $0x120] sm:$0xff] %vm574, %v560
      %594 = vst.msk [vmem:[%s174 + $0x128] sm:$0xff] %vm574, %v561
      %595 = vst.msk [vmem:[%s174 + $0x140] sm:$0xff] %vm574, %v562
      %596 = vst.msk [vmem:[%s174 + $0x148] sm:$0xff] %vm574, %v563
      %597 = vst.msk [vmem:[%s174 + $0x160] sm:$0xff] %vm574, %v564
      %598 = vst.msk [vmem:[%s174 + $0x168] sm:$0xff] %vm574, %v565
      %599 = vst.msk [vmem:[%s174 + $0x180] sm:$0xff] %vm574, %v566
      %600 = vst.msk [vmem:[%s174 + $0x188] sm:$0xff] %vm574, %v567
      %601 = vst.msk [vmem:[%s174 + $0x1a0] sm:$0xff] %vm574, %v568
      %602 = vst.msk [vmem:[%s174 + $0x1a8] sm:$0xff] %vm574, %v569
      %603 = vst.msk [vmem:[%s174 + $0x1c0] sm:$0xff] %vm574, %v570
      %604 = vst.msk [vmem:[%s174 + $0x1c8] sm:$0xff] %vm574, %v571
      %605 = vst.msk [vmem:[%s174 + $0x1e0] sm:$0xff] %vm574, %v572
      %606 = vst.msk [vmem:[%s174 + $0x1e8] sm:$0xff] %vm574, %v573
      %s607 = scalar_lea.vmem %s1, 4
      %v608 = vld [vmem:[%s607] sm:$0xf]
      %v610 = vsel %vm313, %v608, 0
      %612 = vmatprep.subr.mxu0 0.0
      %613 = vmatpush1.msra.mxu0 %v610
      %614 = vmatprep.subr.mxu0 0.0
      %615 = vmatpush1.msra.mxu0 0.0
      %616 = vmatprep.subr.mxu0 0.0
      %617 = vmatpush1.msra.mxu0 0.0
      %618 = vmatprep.subr.mxu0 0.0
      %619 = vmatpush1.msra.mxu0 0.0
      %620 = vmatprep.subr.mxu0 0.0
      %621 = vmatpush1.msra.mxu0 0.0
      %622 = vmatprep.subr.mxu0 0.0
      %623 = vmatpush1.msra.mxu0 0.0
      %624 = vmatprep.subr.mxu0 0.0
      %625 = vmatpush1.msra.mxu0 0.0
      %626 = vmatprep.subr.mxu0 0.0
      %627 = vmatpush1.msra.mxu0 0.0
      %628 = vmatprep.subr.mxu0 0.0
      %629 = vmatpush1.msra.mxu0 0.0
      %630 = vmatprep.subr.mxu0 0.0
      %631 = vmatpush1.msra.mxu0 0.0
      %632 = vmatprep.subr.mxu0 0.0
      %633 = vmatpush1.msra.mxu0 0.0
      %634 = vmatprep.subr.mxu0 0.0
      %635 = vmatpush1.msra.mxu0 0.0
      %636 = vmatprep.subr.mxu0 0.0
      %637 = vmatpush1.msra.mxu0 0.0
      %638 = vmatprep.subr.mxu0 0.0
      %639 = vmatpush1.msra.mxu0 0.0
      %640 = vmatprep.subr.mxu0 0.0
      %641 = vmatpush1.msra.mxu0 0.0
      %642 = vmatprep.subr.mxu0 0.0
      %643 = vmatpush1.msra.mxu0 0.0
      %644 = vmatprep.subr.mxu0 0.0
      %645 = vmatpush1.msra.mxu0 0.0
      %646 = vmatprep.subr.mxu0 0.0
      %647 = vmatpush1.msra.mxu0 0.0
      %648 = vmatprep.subr.mxu0 0.0
      %649 = vmatpush1.msra.mxu0 0.0
      %650 = vmatprep.subr.mxu0 0.0
      %651 = vmatpush1.msra.mxu0 0.0
      %652 = vmatprep.subr.mxu0 0.0
      %653 = vmatpush1.msra.mxu0 0.0
      %654 = vmatprep.subr.mxu0 0.0
      %655 = vmatpush1.msra.mxu0 0.0
      %656 = vmatprep.subr.mxu0 0.0
      %657 = vmatpush1.msra.mxu0 0.0
      %658 = vmatprep.subr.mxu0 0.0
      %659 = vmatpush1.msra.mxu0 0.0
      %660 = vmatprep.subr.mxu0 0.0
      %661 = vmatpush1.msra.mxu0 0.0
      %662 = vmatprep.subr.mxu0 0.0
      %663 = vmatpush1.msra.mxu0 0.0
      %664 = vmatprep.subr.mxu0 0.0
      %665 = vmatpush1.msra.mxu0 0.0
      %666 = vmatprep.subr.mxu0 0.0
      %667 = vmatpush1.msra.mxu0 0.0
      %668 = vmatprep.subr.mxu0 0.0
      %669 = vmatpush1.msra.mxu0 0.0
      %670 = vmatprep.subr.mxu0 0.0
      %671 = vmatpush1.msra.mxu0 0.0
      %672 = vmatprep.subr.mxu0 0.0
      %673 = vmatpush1.msra.mxu0 0.0
      %674 = vmatprep.subr.mxu0 0.0
      %675 = vmatpush1.msra.mxu0 0.0
      %676 = vmatprep.mubr.f32.mxu0 0.0
      %677 = vmatmul.mubr.f32.gmra.mrb[0].mxu0 %v218
      %v678 = vpop.f32.mrb[0].mxu0
      %v679 = vadd.f32 %v214, %v678
      %v680 = vpop.f32.mrb[0].mxu0
      %681 = vmatprep.mubr.f32.mxu0 0.0
      %682 = vmatmul.mubr.f32.gmra.mrb[0].mxu0 %v221
      %v683 = vpop.f32.mrb[0].mxu0
      %v684 = vadd.f32 %v214, %v683
      %v685 = vpop.f32.mrb[0].mxu0
      %686 = vmatprep.mubr.f32.mxu0 0.0
      %687 = vmatmul.mubr.f32.gmra.mrb[0].mxu0 %v224
      %v688 = vpop.f32.mrb[0].mxu0
      %v689 = vadd.f32 %v214, %v688
      %v690 = vpop.f32.mrb[0].mxu0
      %691 = vmatprep.mubr.f32.mxu0 0.0
      %692 = vmatmul.mubr.f32.gmra.mrb[0].mxu0 %v227
      %v693 = vpop.f32.mrb[0].mxu0
      %v694 = vadd.f32 %v214, %v693
      %v695 = vpop.f32.mrb[0].mxu0
      %696 = vmatprep.mubr.f32.mxu0 0.0
      %697 = vmatmul.mubr.f32.gmra.mrb[0].mxu0 %v230
      %v698 = vpop.f32.mrb[0].mxu0
      %v699 = vadd.f32 %v214, %v698
      %v700 = vpop.f32.mrb[0].mxu0
      %701 = vmatprep.mubr.f32.mxu0 0.0
      %702 = vmatmul.mubr.f32.gmra.mrb[0].mxu0 %v233
      %v703 = vpop.f32.mrb[0].mxu0
      %v704 = vadd.f32 %v214, %v703
      %v705 = vpop.f32.mrb[0].mxu0
      %706 = vmatprep.mubr.f32.mxu0 0.0
      %707 = vmatmul.mubr.f32.gmra.mrb[0].mxu0 %v236
      %v708 = vpop.f32.mrb[0].mxu0
      %v709 = vadd.f32 %v214, %v708
      %v710 = vpop.f32.mrb[0].mxu0
      %711 = vmatprep.mubr.f32.mxu0 0.0
      %712 = vmatmul.mubr.f32.gmra.mrb[0].mxu0 %v239
      %v713 = vpop.f32.mrb[0].mxu0
      %v714 = vadd.f32 %v214, %v713
      %v715 = vpop.f32.mrb[0].mxu0
      %716 = vmatprep.mubr.f32.mxu0 0.0
      %717 = vmatmul.mubr.f32.gmra.mrb[0].mxu0 %v242
      %v718 = vpop.f32.mrb[0].mxu0
      %v719 = vadd.f32 %v214, %v718
      %v720 = vpop.f32.mrb[0].mxu0
      %721 = vmatprep.mubr.f32.mxu0 0.0
      %722 = vmatmul.mubr.f32.gmra.mrb[0].mxu0 %v245
      %v723 = vpop.f32.mrb[0].mxu0
      %v724 = vadd.f32 %v214, %v723
      %v725 = vpop.f32.mrb[0].mxu0
      %726 = vmatprep.mubr.f32.mxu0 0.0
      %727 = vmatmul.mubr.f32.gmra.mrb[0].mxu0 %v248
      %v728 = vpop.f32.mrb[0].mxu0
      %v729 = vadd.f32 %v214, %v728
      %v730 = vpop.f32.mrb[0].mxu0
      %731 = vmatprep.mubr.f32.mxu0 0.0
      %732 = vmatmul.mubr.f32.gmra.mrb[0].mxu0 %v251
      %v733 = vpop.f32.mrb[0].mxu0
      %v734 = vadd.f32 %v214, %v733
      %v735 = vpop.f32.mrb[0].mxu0
      %736 = vmatprep.mubr.f32.mxu0 0.0
      %737 = vmatmul.mubr.f32.gmra.mrb[0].mxu0 %v254
      %v738 = vpop.f32.mrb[0].mxu0
      %v739 = vadd.f32 %v214, %v738
      %v740 = vpop.f32.mrb[0].mxu0
      %741 = vmatprep.mubr.f32.mxu0 0.0
      %742 = vmatmul.mubr.f32.gmra.mrb[0].mxu0 %v257
      %v743 = vpop.f32.mrb[0].mxu0
      %v744 = vadd.f32 %v214, %v743
      %v745 = vpop.f32.mrb[0].mxu0
      %746 = vmatprep.mubr.f32.mxu0 0.0
      %747 = vmatmul.mubr.f32.gmra.mrb[0].mxu0 %v260
      %v748 = vpop.f32.mrb[0].mxu0
      %v749 = vadd.f32 %v214, %v748
      %v750 = vpop.f32.mrb[0].mxu0
      %751 = vmatprep.mubr.f32.mxu0 0.0
      %752 = vmatmul.mubr.f32.gmra.mrb[0].mxu0 %v263
      %v753 = vpop.f32.mrb[0].mxu0
      %v754 = vadd.f32 %v214, %v753
      %v755 = vpop.f32.mrb[0].mxu0
      %756 = vmatprep.mubr.f32.mxu0 0.0
      %757 = vmatmul.mubr.f32.gmra.mrb[0].mxu0 %v266
      %v758 = vpop.f32.mrb[0].mxu0
      %v759 = vadd.f32 %v214, %v758
      %v760 = vpop.f32.mrb[0].mxu0
      %761 = vmatprep.mubr.f32.mxu0 0.0
      %762 = vmatmul.mubr.f32.gmra.mrb[0].mxu0 %v269
      %v763 = vpop.f32.mrb[0].mxu0
      %v764 = vadd.f32 %v214, %v763
      %v765 = vpop.f32.mrb[0].mxu0
      %766 = vmatprep.mubr.f32.mxu0 0.0
      %767 = vmatmul.mubr.f32.gmra.mrb[0].mxu0 %v272
      %v768 = vpop.f32.mrb[0].mxu0
      %v769 = vadd.f32 %v214, %v768
      %v770 = vpop.f32.mrb[0].mxu0
      %771 = vmatprep.mubr.f32.mxu0 0.0
      %772 = vmatmul.mubr.f32.gmra.mrb[0].mxu0 %v275
      %v773 = vpop.f32.mrb[0].mxu0
      %v774 = vadd.f32 %v214, %v773
      %v775 = vpop.f32.mrb[0].mxu0
      %776 = vmatprep.mubr.f32.mxu0 0.0
      %777 = vmatmul.mubr.f32.gmra.mrb[0].mxu0 %v278
      %v778 = vpop.f32.mrb[0].mxu0
      %v779 = vadd.f32 %v214, %v778
      %v780 = vpop.f32.mrb[0].mxu0
      %781 = vmatprep.mubr.f32.mxu0 0.0
      %782 = vmatmul.mubr.f32.gmra.mrb[0].mxu0 %v281
      %v783 = vpop.f32.mrb[0].mxu0
      %v784 = vadd.f32 %v214, %v783
      %v785 = vpop.f32.mrb[0].mxu0
      %786 = vmatprep.mubr.f32.mxu0 0.0
      %787 = vmatmul.mubr.f32.gmra.mrb[0].mxu0 %v284
      %v788 = vpop.f32.mrb[0].mxu0
      %v789 = vadd.f32 %v214, %v788
      %v790 = vpop.f32.mrb[0].mxu0
      %791 = vmatprep.mubr.f32.mxu0 0.0
      %792 = vmatmul.mubr.f32.gmra.mrb[0].mxu0 %v287
      %v793 = vpop.f32.mrb[0].mxu0
      %v794 = vadd.f32 %v214, %v793
      %v795 = vpop.f32.mrb[0].mxu0
      %796 = vmatprep.mubr.f32.mxu0 0.0
      %797 = vmatmul.mubr.f32.gmra.mrb[0].mxu0 %v290
      %v798 = vpop.f32.mrb[0].mxu0
      %v799 = vadd.f32 %v214, %v798
      %v800 = vpop.f32.mrb[0].mxu0
      %801 = vmatprep.mubr.f32.mxu0 0.0
      %802 = vmatmul.mubr.f32.gmra.mrb[0].mxu0 %v293
      %v803 = vpop.f32.mrb[0].mxu0
      %v804 = vadd.f32 %v214, %v803
      %v805 = vpop.f32.mrb[0].mxu0
      %806 = vmatprep.mubr.f32.mxu0 0.0
      %807 = vmatmul.mubr.f32.gmra.mrb[0].mxu0 %v296
      %v808 = vpop.f32.mrb[0].mxu0
      %v809 = vadd.f32 %v214, %v808
      %v810 = vpop.f32.mrb[0].mxu0
      %811 = vmatprep.mubr.f32.mxu0 0.0
      %812 = vmatmul.mubr.f32.gmra.mrb[0].mxu0 %v299
      %v813 = vpop.f32.mrb[0].mxu0
      %v814 = vadd.f32 %v214, %v813
      %v815 = vpop.f32.mrb[0].mxu0
      %816 = vmatprep.mubr.f32.mxu0 0.0
      %817 = vmatmul.mubr.f32.gmra.mrb[0].mxu0 %v302
      %v818 = vpop.f32.mrb[0].mxu0
      %v819 = vadd.f32 %v214, %v818
      %v820 = vpop.f32.mrb[0].mxu0
      %821 = vmatprep.mubr.f32.mxu0 0.0
      %822 = vmatmul.mubr.f32.gmra.mrb[0].mxu0 %v305
      %v823 = vpop.f32.mrb[0].mxu0
      %v824 = vadd.f32 %v214, %v823
      %v825 = vpop.f32.mrb[0].mxu0
      %826 = vmatprep.mubr.f32.mxu0 0.0
      %827 = vmatmul.mubr.f32.gmra.mrb[0].mxu0 %v308
      %v828 = vpop.f32.mrb[0].mxu0
      %v829 = vadd.f32 %v214, %v828
      %v830 = vpop.f32.mrb[0].mxu0
      %831 = vmatprep.mubr.f32.mxu0 0.0
      %832 = vmatmul.mubr.f32.gmra.mrb[0].mxu0 %v311
      %v833 = vpop.f32.mrb[0].mxu0
      %v834 = vadd.f32 %v214, %v833
      %v835 = vpop.f32.mrb[0].mxu0
      %836 = vdwg.mxu0
      %v837 = vmax.f32 %v679, 0.0
      %v838 = vmax.f32 %v684, 0.0
      %v839 = vmax.f32 %v689, 0.0
      %v840 = vmax.f32 %v694, 0.0
      %v841 = vmax.f32 %v699, 0.0
      %v842 = vmax.f32 %v704, 0.0
      %v843 = vmax.f32 %v709, 0.0
      %v844 = vmax.f32 %v714, 0.0
      %v845 = vmax.f32 %v719, 0.0
      %v846 = vmax.f32 %v724, 0.0
      %v847 = vmax.f32 %v729, 0.0
      %v848 = vmax.f32 %v734, 0.0
      %v849 = vmax.f32 %v739, 0.0
      %v850 = vmax.f32 %v744, 0.0
      %v851 = vmax.f32 %v749, 0.0
      %v852 = vmax.f32 %v754, 0.0
      %v853 = vmax.f32 %v759, 0.0
      %v854 = vmax.f32 %v764, 0.0
      %v855 = vmax.f32 %v769, 0.0
      %v856 = vmax.f32 %v774, 0.0
      %v857 = vmax.f32 %v779, 0.0
      %v858 = vmax.f32 %v784, 0.0
      %v859 = vmax.f32 %v789, 0.0
      %v860 = vmax.f32 %v794, 0.0
      %v861 = vmax.f32 %v799, 0.0
      %v862 = vmax.f32 %v804, 0.0
      %v863 = vmax.f32 %v809, 0.0
      %v864 = vmax.f32 %v814, 0.0
      %v865 = vmax.f32 %v819, 0.0
      %v866 = vmax.f32 %v824, 0.0
      %v867 = vmax.f32 %v829, 0.0
      %v868 = vmax.f32 %v834, 0.0
      %s869 = scalar_lea.vmem %s174, 16
      %870 = vst.msk [vmem:[%s869] sm:$0xff] %vm574, %v837
      %871 = vst.msk [vmem:[%s869 + $0x8] sm:$0xff] %vm574, %v838
      %872 = vst.msk [vmem:[%s869 + $0x20] sm:$0xff] %vm574, %v839
      %873 = vst.msk [vmem:[%s869 + $0x28] sm:$0xff] %vm574, %v840
      %874 = vst.msk [vmem:[%s869 + $0x40] sm:$0xff] %vm574, %v841
      %875 = vst.msk [vmem:[%s869 + $0x48] sm:$0xff] %vm574, %v842
      %876 = vst.msk [vmem:[%s869 + $0x60] sm:$0xff] %vm574, %v843
      %877 = vst.msk [vmem:[%s869 + $0x68] sm:$0xff] %vm574, %v844
      %878 = vst.msk [vmem:[%s869 + $0x80] sm:$0xff] %vm574, %v845
      %879 = vst.msk [vmem:[%s869 + $0x88] sm:$0xff] %vm574, %v846
      %880 = vst.msk [vmem:[%s869 + $0xa0] sm:$0xff] %vm574, %v847
      %881 = vst.msk [vmem:[%s869 + $0xa8] sm:$0xff] %vm574, %v848
      %882 = vst.msk [vmem:[%s869 + $0xc0] sm:$0xff] %vm574, %v849
      %883 = vst.msk [vmem:[%s869 + $0xc8] sm:$0xff] %vm574, %v850
      %884 = vst.msk [vmem:[%s869 + $0xe0] sm:$0xff] %vm574, %v851
      %885 = vst.msk [vmem:[%s869 + $0xe8] sm:$0xff] %vm574, %v852
      %886 = vst.msk [vmem:[%s869 + $0x100] sm:$0xff] %vm574, %v853
      %887 = vst.msk [vmem:[%s869 + $0x108] sm:$0xff] %vm574, %v854
      %888 = vst.msk [vmem:[%s869 + $0x120] sm:$0xff] %vm574, %v855
      %889 = vst.msk [vmem:[%s869 + $0x128] sm:$0xff] %vm574, %v856
      %890 = vst.msk [vmem:[%s869 + $0x140] sm:$0xff] %vm574, %v857
      %891 = vst.msk [vmem:[%s869 + $0x148] sm:$0xff] %vm574, %v858
      %892 = vst.msk [vmem:[%s869 + $0x160] sm:$0xff] %vm574, %v859
      %893 = vst.msk [vmem:[%s869 + $0x168] sm:$0xff] %vm574, %v860
      %894 = vst.msk [vmem:[%s869 + $0x180] sm:$0xff] %vm574, %v861
      %895 = vst.msk [vmem:[%s869 + $0x188] sm:$0xff] %vm574, %v862
      %896 = vst.msk [vmem:[%s869 + $0x1a0] sm:$0xff] %vm574, %v863
      %897 = vst.msk [vmem:[%s869 + $0x1a8] sm:$0xff] %vm574, %v864
      %898 = vst.msk [vmem:[%s869 + $0x1c0] sm:$0xff] %vm574, %v865
      %899 = vst.msk [vmem:[%s869 + $0x1c8] sm:$0xff] %vm574, %v866
      %900 = vst.msk [vmem:[%s869 + $0x1e0] sm:$0xff] %vm574, %v867
      %901 = vst.msk [vmem:[%s869 + $0x1e8] sm:$0xff] %vm574, %v868
      %s902 = smul.u32 16, %s14
      %p903 = scmp.lt.s32.totalorder %s902, 31
      %s904 = scalar_select %p903, %s902, 31
      %s905 = smul.addr %s904, 4
      %s906 = smul.addr %s905, 8
      %s907 = scalar_lea.vmem %s3, %s906
      // Predicated region
      $region33: #{tpu_custom_call.1} parent=31 // pred_check
        %p908 = pneg %p100
      $region34: #{tpu_custom_call.1} parent=31 // pred_check_branch
        %910 = sbr.rel (%p908) target = $region36
      $region35: #{tpu_custom_call.1} parent=31 // pred_region
        %s911 = smul.u32 16, %s14
      $region36: #{tpu_custom_call.1} parent=31 // pred_fallthru
        _
    $region32: #{tpu_custom_call.1} parent=5 // pred_fallthru
      _
    %p912 = scmp.le.s32.totalorder 2, %s9
    // Predicated region
    $region37: #{tpu_custom_call.1} parent=5 // pred_check
      %p913 = pneg %p912
    $region38: #{tpu_custom_call.1} parent=5 // pred_check_branch
      %915 = sbr.rel (%p913) target = $region40
    $region39: #{tpu_custom_call.1} parent=5 // pred_region
      %s916 = ssub.s32 %s9, 2
      // Predicated region
      $region41: #{tpu_custom_call.1} parent=39 // pred_check
        %p917 = pneg %p106
      $region42: #{tpu_custom_call.1} parent=39 // pred_check_branch
        %919 = sbr.rel (%p917) target = $region44
      $region43: #{tpu_custom_call.1} parent=39 // pred_region
        %s920 = smul.u32 16, %s15
        %p921 = scmp.lt.s32.totalorder %s920, 31
        %s922 = scalar_select %p921, %s920, 31
        %s923 = smul.addr %s922, 4
        %s924 = smul.addr %s923, 8
        %s925 = scalar_lea.vmem %s3, %s924
      $region44: #{tpu_custom_call.1} parent=39 // pred_fallthru
        _
    $region40: #{tpu_custom_call.1} parent=5 // pred_fallthru
      _
  $region6: #{tpu_custom_call.1} parent=0 // loop_footer
    %s13 = sadd.s32 1, %s9
  $region7: #{tpu_custom_call.1} parent=0 // loop_footer_branch
    %8 = sbr.rel target = $region3
  $region8: #{tpu_custom_call.1} parent=0 // loop_exit
    _

// kernel: tpu_custom_call.1
$region0: #{tpu_custom_call.1}
  #allocation0 [shape = 'u32[]', space=smem, size = 0x4, offset = 0x4, fixed_abs, tag = 'smem constant byte address 0x4 - core index']
  #allocation1 [shape = 'u32[144,128]{1,0:T(1,128)}', space=vmem, size = 0x12000, scoped, tag = 'internal scratch']
  %s0 = inlined_call_operand.vmem [shape: f32[512,4], index: 0, kind: input, shape index: {}]
  %s1 = inlined_call_operand.vmem [shape: f32[2,4,16], index: 1, kind: input, shape index: {}]
  %s2 = inlined_call_operand.vmem [shape: f32[1,16], index: 2, kind: input, shape index: {}]
  %s3 = inlined_call_operand.vmem [shape: f32[32,2,16,16], index: 3, kind: output, shape index: {}]
  %s4 = sld [smem:[#allocation0]]
  $region45: #{tpu_custom_call.1} parent=0
    _
  %s6 = ssub.s32 1, %s4
  %s7 = scalar_select 0, %s6, %s4
  loop: start=0, step=1, limit=4
  $region2: #{tpu_custom_call.1} parent=0 // loop_pre_header
    _
  $region3: #{tpu_custom_call.1} parent=0 // loop_header
    %s9 = sphi 0, %s13
    %p10 = scmp.ge.s32.totalorder %s9, 4
    %s19 = sphi 0, %s21
    %s22 = sphi 0, %s19
    %s23 = sphi 0, %s22
    %s39 = sphi 0, %s23
    %s43 = sphi 0, %s43
    %s45 = sphi 0, %s43
    %s46 = sphi 0, %s45
    %s60 = sphi 0, %s46
    %s64 = sphi 0, %s64
    %s66 = sphi 0, %s64
    %s67 = sphi 0, %s66
    %s81 = sphi 0, %s67
    %s87 = sphi 0, %s89
    %s90 = sphi 0, %s87
    %s91 = sphi 0, %s90
    %s107 = sphi 0, %s91
  $region4: #{tpu_custom_call.1} parent=0 // loop_header_branch
    %12 = sbr.rel (%p10) target = $region8
  $region5: #{tpu_custom_call.1} parent=0 // loop_body
    %s14 = ssub.s32 %s9, 1
    %s15 = ssub.s32 %s9, 2
    %s16 = sadd.s32 %s9, 1
    %s17 = ssub.s32 %s9, %s16
    %p18 = scmp.eq.s32.totalorder %s17, 0
    %s20 = sadd.s32 %s19, 1
    %s21 = scalar_select %p18, %s19, %s20
    %p24 = pneg %p18
    %p25 = scmp.eq.s32.totalorder %s9, 1
    %p26 = por %p24, %p25
    %p27 = scmp.ne.s32.totalorder %s19, %s22
    %p28 = scmp.eq.s32.totalorder %s9, 0
    %p29 = por %p27, %p28
    %p30 = scmp.ne.s32.totalorder %s19, %s22
    %p31 = scmp.eq.s32.totalorder %s14, 1
    %p32 = por %p30, %p31
    %p33 = scmp.ne.s32.totalorder %s22, %s23
    %p34 = scmp.eq.s32.totalorder %s14, 0
    %p35 = por %p33, %p34
    %p36 = scmp.ne.s32.totalorder %s22, %s23
    %p37 = scmp.eq.s32.totalorder %s15, 1
    %p38 = por %p36, %p37
    %p40 = scmp.ne.s32.totalorder %s23, %s39
    %p41 = scmp.eq.s32.totalorder %s15, 0
    %p42 = por %p40, %p41
    %s44 = sadd.s32 %s43, 1
    %p47 = scmp.eq.s32.totalorder %s9, 1
    %p48 = scmp.ne.s32.totalorder %s43, %s45
    %p49 = scmp.eq.s32.totalorder %s9, 0
    %p50 = por %p48, %p49
    %p51 = scmp.ne.s32.totalorder %s43, %s45
    %p52 = scmp.eq.s32.totalorder %s14, 1
    %p53 = por %p51, %p52
    %p54 = scmp.ne.s32.totalorder %s45, %s46
    %p55 = scmp.eq.s32.totalorder %s14, 0
    %p56 = por %p54, %p55
    %p57 = scmp.ne.s32.totalorder %s45, %s46
    %p58 = scmp.eq.s32.totalorder %s15, 1
    %p59 = por %p57, %p58
    %p61 = scmp.ne.s32.totalorder %s46, %s60
    %p62 = scmp.eq.s32.totalorder %s15, 0
    %p63 = por %p61, %p62
    %s65 = sadd.s32 %s64, 1
    %p68 = scmp.eq.s32.totalorder %s9, 1
    %p69 = scmp.ne.s32.totalorder %s64, %s66
    %p70 = scmp.eq.s32.totalorder %s9, 0
    %p71 = por %p69, %p70
    %p72 = scmp.ne.s32.totalorder %s64, %s66
    %p73 = scmp.eq.s32.totalorder %s14, 1
    %p74 = por %p72, %p73
    %p75 = scmp.ne.s32.totalorder %s66, %s67
    %p76 = scmp.eq.s32.totalorder %s14, 0
    %p77 = por %p75, %p76
    %p78 = scmp.ne.s32.totalorder %s66, %s67
    %p79 = scmp.eq.s32.totalorder %s15, 1
    %p80 = por %p78, %p79
    %p82 = scmp.ne.s32.totalorder %s67, %s81
    %p83 = scmp.eq.s32.totalorder %s15, 0
    %p84 = por %p82, %p83
    %s85 = ssub.s32 %s9, %s16
    %p86 = scmp.eq.s32.totalorder %s85, 0
    %s88 = sadd.s32 %s87, 1
    %s89 = scalar_select %p86, %s87, %s88
    %p92 = pneg %p86
    %p93 = scmp.eq.s32.totalorder %s9, 1
    %p94 = por %p92, %p93
    %p95 = scmp.ne.s32.totalorder %s87, %s90
    %p96 = scmp.eq.s32.totalorder %s9, 0
    %p97 = por %p95, %p96
    %p98 = scmp.ne.s32.totalorder %s87, %s90
    %p99 = scmp.eq.s32.totalorder %s14, 1
    %p100 = por %p98, %p99
    %p101 = scmp.ne.s32.totalorder %s90, %s91
    %p102 = scmp.eq.s32.totalorder %s14, 0
    %p103 = por %p101, %p102
    %p104 = scmp.ne.s32.totalorder %s90, %s91
    %p105 = scmp.eq.s32.totalorder %s15, 1
    %p106 = por %p104, %p105
    %p108 = scmp.ne.s32.totalorder %s91, %s107
    %p109 = scmp.eq.s32.totalorder %s15, 0
    %p110 = por %p108, %p109
    %p111 = scmp.le.s32.totalorder 1, %s9
    %p112 = scmp.lt.s32.totalorder %s9, 3
    %p113 = pnand %p111, %p112
    %p114 = pneg %p113
    // Predicated region
    $region9: #{tpu_custom_call.1} parent=5 // pred_check
      _
    $region10: #{tpu_custom_call.1} parent=5 // pred_check_branch
      %116 = sbr.rel (%p113) target = $region12
    $region11: #{tpu_custom_call.1} parent=5 // pred_region
      %s117 = ssub.s32 %s9, 1
      // Predicated region
      $region13: #{tpu_custom_call.1} parent=11 // pred_check
        %p118 = pneg %p56
      $region14: #{tpu_custom_call.1} parent=11 // pred_check_branch
        %120 = sbr.rel (%p118) target = $region16
      $region15: #{tpu_custom_call.1} parent=11 // pred_region
        _
      $region16: #{tpu_custom_call.1} parent=11 // pred_fallthru
        _
      // Predicated region
      $region17: #{tpu_custom_call.1} parent=11 // pred_check
        %p121 = pneg %p77
      $region18: #{tpu_custom_call.1} parent=11 // pred_check_branch
        %123 = sbr.rel (%p121) target = $region20
      $region19: #{tpu_custom_call.1} parent=11 // pred_region
        _
      $region20: #{tpu_custom_call.1} parent=11 // pred_fallthru
        _
    $region12: #{tpu_custom_call.1} parent=5 // pred_fallthru
      _
    %p124 = scmp.lt.s32.totalorder %s9, 2
    // Predicated region
    $region21: #{tpu_custom_call.1} parent=5 // pred_check
      %p125 = pneg %p124
    $region22: #{tpu_custom_call.1} parent=5 // pred_check_branch
      %127 = sbr.rel (%p125) target = $region24
    $region23: #{tpu_custom_call.1} parent=5 // pred_region
      // Predicated region
      $region25: #{tpu_custom_call.1} parent=23 // pred_check
        %p128 = pneg %p29
      $region26: #{tpu_custom_call.1} parent=23 // pred_check_branch
        %130 = sbr.rel (%p128) target = $region28
      $region27: #{tpu_custom_call.1} parent=23 // pred_region
        %s131 = smul.u32 32, %s9
        %p132 = scmp.lt.s32.totalorder %s131, 63
        %s133 = scalar_select %p132, %s131, 63
        %s134 = smul.addr %s133, 8
        %s135 = scalar_lea.vmem %s0, %s134
        %s136 = smul.u32 32, %s9
      $region28: #{tpu_custom_call.1} parent=23 // pred_fallthru
        _
    $region24: #{tpu_custom_call.1} parent=5 // pred_fallthru
      _
    %p137 = scmp.le.s32.totalorder 1, %s9
    %p138 = scmp.lt.s32.totalorder %s9, 3
    %p139 = pnand %p137, %p138
    %p140 = pneg %p139
    // Predicated region
    $region29: #{tpu_custom_call.1} parent=5 // pred_check
      _
    $region30: #{tpu_custom_call.1} parent=5 // pred_check_branch
      %142 = sbr.rel (%p139) target = $region32
    $region31: #{tpu_custom_call.1} parent=5 // pred_region
      %s143 = ssub.s32 %s9, 1
      %s144 = smul.u32 32, %s14
      %p145 = scmp.lt.s32.totalorder %s144, 63
      %s146 = scalar_select %p145, %s144, 63
      %s147 = smul.addr %s146, 8
      %s148 = scalar_lea.vmem %s0, %s147
      %p149 = pneg %p35
      %p150 = pneg %p32
      %p151 = pneg %p56
      %p152 = pneg %p53
      %p153 = pneg %p77
      %p154 = pneg %p74
      %p155 = pneg %p103
      %p156 = pneg %p100
      %s157 = smul.u32 16, %s14
      %p158 = scmp.lt.s32.totalorder %s157, 31
      %s159 = scalar_select %p158, %s157, 31
      %s160 = smul.addr %s159, 4
      %s161 = smul.addr %s160, 8
      %s162 = scalar_lea.vmem %s3, %s161
      %s163 = smul.u32 32, %s14
      %p164 = scmp.lt.s32.totalorder %s163, 63
      %s165 = scalar_select %p164, %s163, 63
      %s166 = smul.addr %s165, 8
      %s167 = scalar_lea.vmem %s0, %s166
      %s168 = smul.u32 32, %s14
      %s169 = smul.u32 16, %s14
      %p170 = scmp.lt.s32.totalorder %s169, 31
      %s171 = scalar_select %p170, %s169, 31
      %s172 = smul.addr %s171, 4
      %s173 = smul.addr %s172, 8
      %s174 = scalar_lea.vmem %s3, %s173
      %s175 = smul.u32 16, %s14
      %v176 = vld [vmem:[%s167] sm:$0xff]
      %v177 = vld [vmem:[%s167 + $0x8] sm:$0xff]
      %v178 = vld [vmem:[%s167 + $0x10] sm:$0xff]
      %v179 = vld [vmem:[%s167 + $0x18] sm:$0xff]
      %v180 = vld [vmem:[%s167 + $0x20] sm:$0xff]
      %v181 = vld [vmem:[%s167 + $0x28] sm:$0xff]
      %v182 = vld [vmem:[%s167 + $0x30] sm:$0xff]
      %v183 = vld [vmem:[%s167 + $0x38] sm:$0xff]
      %v184 = vld [vmem:[%s167 + $0x40] sm:$0xff]
      %v185 = vld [vmem:[%s167 + $0x48] sm:$0xff]
      %v186 = vld [vmem:[%s167 + $0x50] sm:$0xff]
      %v187 = vld [vmem:[%s167 + $0x58] sm:$0xff]
      %v188 = vld [vmem:[%s167 + $0x60] sm:$0xff]
      %v189 = vld [vmem:[%s167 + $0x68] sm:$0xff]
      %v190 = vld [vmem:[%s167 + $0x70] sm:$0xff]
      %v191 = vld [vmem:[%s167 + $0x78] sm:$0xff]
      %v192 = vld [vmem:[%s167 + $0x80] sm:$0xff]
      %v193 = vld [vmem:[%s167 + $0x88] sm:$0xff]
      %v194 = vld [vmem:[%s167 + $0x90] sm:$0xff]
      %v195 = vld [vmem:[%s167 + $0x98] sm:$0xff]
      %v196 = vld [vmem:[%s167 + $0xa0] sm:$0xff]
      %v197 = vld [vmem:[%s167 + $0xa8] sm:$0xff]
      %v198 = vld [vmem:[%s167 + $0xb0] sm:$0xff]
      %v199 = vld [vmem:[%s167 + $0xb8] sm:$0xff]
      %v200 = vld [vmem:[%s167 + $0xc0] sm:$0xff]
      %v201 = vld [vmem:[%s167 + $0xc8] sm:$0xff]
      %v202 = vld [vmem:[%s167 + $0xd0] sm:$0xff]
      %v203 = vld [vmem:[%s167 + $0xd8] sm:$0xff]
      %v204 = vld [vmem:[%s167 + $0xe0] sm:$0xff]
      %v205 = vld [vmem:[%s167 + $0xe8] sm:$0xff]
      %v206 = vld [vmem:[%s167 + $0xf0] sm:$0xff]
      %v207 = vld [vmem:[%s167 + $0xf8] sm:$0xff]
      %v208 = vld [vmem:[%s2] sm:$0x1]
      %v209 = vld [vmem:[%s1] sm:$0xf]
      %v211 = vlaneseq
      %v212 = vshrl.u32 %v211, 7
      %v213 = vsub.s32 0, %v212
      %v214 = vrot.slane %v208, %v213
      %vm216 = vcmask 31744
      %v218 = vsel %vm216, %v176, 0
      %v221 = vsel %vm216, %v177, 0
      %v224 = vsel %vm216, %v178, 0
      %v227 = vsel %vm216, %v179, 0
      %v230 = vsel %vm216, %v180, 0
      %v233 = vsel %vm216, %v181, 0
      %v236 = vsel %vm216, %v182, 0
      %v239 = vsel %vm216, %v183, 0
      %v242 = vsel %vm216, %v184, 0
      %v245 = vsel %vm216, %v185, 0
      %v248 = vsel %vm216, %v186, 0
      %v251 = vsel %vm216, %v187, 0
      %v254 = vsel %vm216, %v188, 0
      %v257 = vsel %vm216, %v189, 0
      %v260 = vsel %vm216, %v190, 0
      %v263 = vsel %vm216, %v191, 0
      %v266 = vsel %vm216, %v192, 0
      %v269 = vsel %vm216, %v193, 0
      %v272 = vsel %vm216, %v194, 0
      %v275 = vsel %vm216, %v195, 0
      %v278 = vsel %vm216, %v196, 0
      %v281 = vsel %vm216, %v197, 0
      %v284 = vsel %vm216, %v198, 0
      %v287 = vsel %vm216, %v199, 0
      %v290 = vsel %vm216, %v200, 0
      %v293 = vsel %vm216, %v201, 0
      %v296 = vsel %vm216, %v202, 0
      %v299 = vsel %vm216, %v203, 0
      %v302 = vsel %vm216, %v204, 0
      %v305 = vsel %vm216, %v205, 0
      %v308 = vsel %vm216, %v206, 0
      %v311 = vsel %vm216, %v207, 0
      %vm313 = vcmask 1043456
      %v315 = vsel %vm313, %v209, 0
      %317 = vmatprep.subr.mxu0 0.0
      %318 = vmatpush1.msra.mxu0 %v315
      %319 = vmatprep.subr.mxu0 0.0
      %320 = vmatpush1.msra.mxu0 0.0
      %321 = vmatprep.subr.mxu0 0.0
      %322 = vmatpush1.msra.mxu0 0.0
      %323 = vmatprep.subr.mxu0 0.0
      %324 = vmatpush1.msra.mxu0 0.0
      %325 = vmatprep.subr.mxu0 0.0
      %326 = vmatpush1.msra.mxu0 0.0
      %327 = vmatprep.subr.mxu0 0.0
      %328 = vmatpush1.msra.mxu0 0.0
      %329 = vmatprep.subr.mxu0 0.0
      %330 = vmatpush1.msra.mxu0 0.0
      %331 = vmatprep.subr.mxu0 0.0
      %332 = vmatpush1.msra.mxu0 0.0
      %333 = vmatprep.subr.mxu0 0.0
      %334 = vmatpush1.msra.mxu0 0.0
      %335 = vmatprep.subr.mxu0 0.0
      %336 = vmatpush1.msra.mxu0 0.0
      %337 = vmatprep.subr.mxu0 0.0
      %338 = vmatpush1.msra.mxu0 0.0
      %339 = vmatprep.subr.mxu0 0.0
      %340 = vmatpush1.msra.mxu0 0.0
      %341 = vmatprep.subr.mxu0 0.0
      %342 = vmatpush1.msra.mxu0 0.0
      %343 = vmatprep.subr.mxu0 0.0
      %344 = vmatpush1.msra.mxu0 0.0
      %345 = vmatprep.subr.mxu0 0.0
      %346 = vmatpush1.msra.mxu0 0.0
      %347 = vmatprep.subr.mxu0 0.0
      %348 = vmatpush1.msra.mxu0 0.0
      %349 = vmatprep.subr.mxu0 0.0
      %350 = vmatpush1.msra.mxu0 0.0
      %351 = vmatprep.subr.mxu0 0.0
      %352 = vmatpush1.msra.mxu0 0.0
      %353 = vmatprep.subr.mxu0 0.0
      %354 = vmatpush1.msra.mxu0 0.0
      %355 = vmatprep.subr.mxu0 0.0
      %356 = vmatpush1.msra.mxu0 0.0
      %357 = vmatprep.subr.mxu0 0.0
      %358 = vmatpush1.msra.mxu0 0.0
      %359 = vmatprep.subr.mxu0 0.0
      %360 = vmatpush1.msra.mxu0 0.0
      %361 = vmatprep.subr.mxu0 0.0
      %362 = vmatpush1.msra.mxu0 0.0
      %363 = vmatprep.subr.mxu0 0.0
      %364 = vmatpush1.msra.mxu0 0.0
      %365 = vmatprep.subr.mxu0 0.0
      %366 = vmatpush1.msra.mxu0 0.0
      %367 = vmatprep.subr.mxu0 0.0
      %368 = vmatpush1.msra.mxu0 0.0
      %369 = vmatprep.subr.mxu0 0.0
      %370 = vmatpush1.msra.mxu0 0.0
      %371 = vmatprep.subr.mxu0 0.0
      %372 = vmatpush1.msra.mxu0 0.0
      %373 = vmatprep.subr.mxu0 0.0
      %374 = vmatpush1.msra.mxu0 0.0
      %375 = vmatprep.subr.mxu0 0.0
      %376 = vmatpush1.msra.mxu0 0.0
      %377 = vmatprep.subr.mxu0 0.0
      %378 = vmatpush1.msra.mxu0 0.0
      %379 = vmatprep.subr.mxu0 0.0
      %380 = vmatpush1.msra.mxu0 0.0
      %381 = vmatprep.mubr.f32.mxu0 0.0
      %382 = vmatmul.mubr.f32.gmra.mrb[0].mxu0 %v218
      %v383 = vpop.f32.mrb[0].mxu0
      %v384 = vadd.f32 %v214, %v383
      %v385 = vpop.f32.mrb[0].mxu0
      %386 = vmatprep.mubr.f32.mxu0 0.0
      %387 = vmatmul.mubr.f32.gmra.mrb[0].mxu0 %v221
      %v388 = vpop.f32.mrb[0].mxu0
      %v389 = vadd.f32 %v214, %v388
      %v390 = vpop.f32.mrb[0].mxu0
      %391 = vmatprep.mubr.f32.mxu0 0.0
      %392 = vmatmul.mubr.f32.gmra.mrb[0].mxu0 %v224
      %v393 = vpop.f32.mrb[0].mxu0
      %v394 = vadd.f32 %v214, %v393
      %v395 = vpop.f32.mrb[0].mxu0
      %396 = vmatprep.mubr.f32.mxu0 0.0
      %397 = vmatmul.mubr.f32.gmra.mrb[0].mxu0 %v227
      %v398 = vpop.f32.mrb[0].mxu0
      %v399 = vadd.f32 %v214, %v398
      %v400 = vpop.f32.mrb[0].mxu0
      %401 = vmatprep.mubr.f32.mxu0 0.0
      %402 = vmatmul.mubr.f32.gmra.mrb[0].mxu0 %v230
      %v403 = vpop.f32.mrb[0].mxu0
      %v404 = vadd.f32 %v214, %v403
      %v405 = vpop.f32.mrb[0].mxu0
      %406 = vmatprep.mubr.f32.mxu0 0.0
      %407 = vmatmul.mubr.f32.gmra.mrb[0].mxu0 %v233
      %v408 = vpop.f32.mrb[0].mxu0
      %v409 = vadd.f32 %v214, %v408
      %v410 = vpop.f32.mrb[0].mxu0
      %411 = vmatprep.mubr.f32.mxu0 0.0
      %412 = vmatmul.mubr.f32.gmra.mrb[0].mxu0 %v236
      %v413 = vpop.f32.mrb[0].mxu0
      %v414 = vadd.f32 %v214, %v413
      %v415 = vpop.f32.mrb[0].mxu0
      %416 = vmatprep.mubr.f32.mxu0 0.0
      %417 = vmatmul.mubr.f32.gmra.mrb[0].mxu0 %v239
      %v418 = vpop.f32.mrb[0].mxu0
      %v419 = vadd.f32 %v214, %v418
      %v420 = vpop.f32.mrb[0].mxu0
      %421 = vmatprep.mubr.f32.mxu0 0.0
      %422 = vmatmul.mubr.f32.gmra.mrb[0].mxu0 %v242
      %v423 = vpop.f32.mrb[0].mxu0
      %v424 = vadd.f32 %v214, %v423
      %v425 = vpop.f32.mrb[0].mxu0
      %426 = vmatprep.mubr.f32.mxu0 0.0
      %427 = vmatmul.mubr.f32.gmra.mrb[0].mxu0 %v245
      %v428 = vpop.f32.mrb[0].mxu0
      %v429 = vadd.f32 %v214, %v428
      %v430 = vpop.f32.mrb[0].mxu0
      %431 = vmatprep.mubr.f32.mxu0 0.0
      %432 = vmatmul.mubr.f32.gmra.mrb[0].mxu0 %v248
      %v433 = vpop.f32.mrb[0].mxu0
      %v434 = vadd.f32 %v214, %v433
      %v435 = vpop.f32.mrb[0].mxu0
      %436 = vmatprep.mubr.f32.mxu0 0.0
      %437 = vmatmul.mubr.f32.gmra.mrb[0].mxu0 %v251
      %v438 = vpop.f32.mrb[0].mxu0
      %v439 = vadd.f32 %v214, %v438
      %v440 = vpop.f32.mrb[0].mxu0
      %441 = vmatprep.mubr.f32.mxu0 0.0
      %442 = vmatmul.mubr.f32.gmra.mrb[0].mxu0 %v254
      %v443 = vpop.f32.mrb[0].mxu0
      %v444 = vadd.f32 %v214, %v443
      %v445 = vpop.f32.mrb[0].mxu0
      %446 = vmatprep.mubr.f32.mxu0 0.0
      %447 = vmatmul.mubr.f32.gmra.mrb[0].mxu0 %v257
      %v448 = vpop.f32.mrb[0].mxu0
      %v449 = vadd.f32 %v214, %v448
      %v450 = vpop.f32.mrb[0].mxu0
      %451 = vmatprep.mubr.f32.mxu0 0.0
      %452 = vmatmul.mubr.f32.gmra.mrb[0].mxu0 %v260
      %v453 = vpop.f32.mrb[0].mxu0
      %v454 = vadd.f32 %v214, %v453
      %v455 = vpop.f32.mrb[0].mxu0
      %456 = vmatprep.mubr.f32.mxu0 0.0
      %457 = vmatmul.mubr.f32.gmra.mrb[0].mxu0 %v263
      %v458 = vpop.f32.mrb[0].mxu0
      %v459 = vadd.f32 %v214, %v458
      %v460 = vpop.f32.mrb[0].mxu0
      %461 = vmatprep.mubr.f32.mxu0 0.0
      %462 = vmatmul.mubr.f32.gmra.mrb[0].mxu0 %v266
      %v463 = vpop.f32.mrb[0].mxu0
      %v464 = vadd.f32 %v214, %v463
      %v465 = vpop.f32.mrb[0].mxu0
      %466 = vmatprep.mubr.f32.mxu0 0.0
      %467 = vmatmul.mubr.f32.gmra.mrb[0].mxu0 %v269
      %v468 = vpop.f32.mrb[0].mxu0
      %v469 = vadd.f32 %v214, %v468
      %v470 = vpop.f32.mrb[0].mxu0
      %471 = vmatprep.mubr.f32.mxu0 0.0
      %472 = vmatmul.mubr.f32.gmra.mrb[0].mxu0 %v272
      %v473 = vpop.f32.mrb[0].mxu0
      %v474 = vadd.f32 %v214, %v473
      %v475 = vpop.f32.mrb[0].mxu0
      %476 = vmatprep.mubr.f32.mxu0 0.0
      %477 = vmatmul.mubr.f32.gmra.mrb[0].mxu0 %v275
      %v478 = vpop.f32.mrb[0].mxu0
      %v479 = vadd.f32 %v214, %v478
      %v480 = vpop.f32.mrb[0].mxu0
      %481 = vmatprep.mubr.f32.mxu0 0.0
      %482 = vmatmul.mubr.f32.gmra.mrb[0].mxu0 %v278
      %v483 = vpop.f32.mrb[0].mxu0
      %v484 = vadd.f32 %v214, %v483
      %v485 = vpop.f32.mrb[0].mxu0
      %486 = vmatprep.mubr.f32.mxu0 0.0
      %487 = vmatmul.mubr.f32.gmra.mrb[0].mxu0 %v281
      %v488 = vpop.f32.mrb[0].mxu0
      %v489 = vadd.f32 %v214, %v488
      %v490 = vpop.f32.mrb[0].mxu0
      %491 = vmatprep.mubr.f32.mxu0 0.0
      %492 = vmatmul.mubr.f32.gmra.mrb[0].mxu0 %v284
      %v493 = vpop.f32.mrb[0].mxu0
      %v494 = vadd.f32 %v214, %v493
      %v495 = vpop.f32.mrb[0].mxu0
      %496 = vmatprep.mubr.f32.mxu0 0.0
      %497 = vmatmul.mubr.f32.gmra.mrb[0].mxu0 %v287
      %v498 = vpop.f32.mrb[0].mxu0
      %v499 = vadd.f32 %v214, %v498
      %v500 = vpop.f32.mrb[0].mxu0
      %501 = vmatprep.mubr.f32.mxu0 0.0
      %502 = vmatmul.mubr.f32.gmra.mrb[0].mxu0 %v290
      %v503 = vpop.f32.mrb[0].mxu0
      %v504 = vadd.f32 %v214, %v503
      %v505 = vpop.f32.mrb[0].mxu0
      %506 = vmatprep.mubr.f32.mxu0 0.0
      %507 = vmatmul.mubr.f32.gmra.mrb[0].mxu0 %v293
      %v508 = vpop.f32.mrb[0].mxu0
      %v509 = vadd.f32 %v214, %v508
      %v510 = vpop.f32.mrb[0].mxu0
      %511 = vmatprep.mubr.f32.mxu0 0.0
      %512 = vmatmul.mubr.f32.gmra.mrb[0].mxu0 %v296
      %v513 = vpop.f32.mrb[0].mxu0
      %v514 = vadd.f32 %v214, %v513
      %v515 = vpop.f32.mrb[0].mxu0
      %516 = vmatprep.mubr.f32.mxu0 0.0
      %517 = vmatmul.mubr.f32.gmra.mrb[0].mxu0 %v299
      %v518 = vpop.f32.mrb[0].mxu0
      %v519 = vadd.f32 %v214, %v518
      %v520 = vpop.f32.mrb[0].mxu0
      %521 = vmatprep.mubr.f32.mxu0 0.0
      %522 = vmatmul.mubr.f32.gmra.mrb[0].mxu0 %v302
      %v523 = vpop.f32.mrb[0].mxu0
      %v524 = vadd.f32 %v214, %v523
      %v525 = vpop.f32.mrb[0].mxu0
      %526 = vmatprep.mubr.f32.mxu0 0.0
      %527 = vmatmul.mubr.f32.gmra.mrb[0].mxu0 %v305
      %v528 = vpop.f32.mrb[0].mxu0
      %v529 = vadd.f32 %v214, %v528
      %v530 = vpop.f32.mrb[0].mxu0
      %531 = vmatprep.mubr.f32.mxu0 0.0
      %532 = vmatmul.mubr.f32.gmra.mrb[0].mxu0 %v308
      %v533 = vpop.f32.mrb[0].mxu0
      %v534 = vadd.f32 %v214, %v533
      %v535 = vpop.f32.mrb[0].mxu0
      %536 = vmatprep.mubr.f32.mxu0 0.0
      %537 = vmatmul.mubr.f32.gmra.mrb[0].mxu0 %v311
      %v538 = vpop.f32.mrb[0].mxu0
      %v539 = vadd.f32 %v214, %v538
      %v540 = vpop.f32.mrb[0].mxu0
      %541 = vdwg.mxu0
      %v542 = vmax.f32 %v384, 0.0
      %v543 = vmax.f32 %v389, 0.0
      %v544 = vmax.f32 %v394, 0.0
      %v545 = vmax.f32 %v399, 0.0
      %v546 = vmax.f32 %v404, 0.0
      %v547 = vmax.f32 %v409, 0.0
      %v548 = vmax.f32 %v414, 0.0
      %v549 = vmax.f32 %v419, 0.0
      %v550 = vmax.f32 %v424, 0.0
      %v551 = vmax.f32 %v429, 0.0
      %v552 = vmax.f32 %v434, 0.0
      %v553 = vmax.f32 %v439, 0.0
      %v554 = vmax.f32 %v444, 0.0
      %v555 = vmax.f32 %v449, 0.0
      %v556 = vmax.f32 %v454, 0.0
      %v557 = vmax.f32 %v459, 0.0
      %v558 = vmax.f32 %v464, 0.0
      %v559 = vmax.f32 %v469, 0.0
      %v560 = vmax.f32 %v474, 0.0
      %v561 = vmax.f32 %v479, 0.0
      %v562 = vmax.f32 %v484, 0.0
      %v563 = vmax.f32 %v489, 0.0
      %v564 = vmax.f32 %v494, 0.0
      %v565 = vmax.f32 %v499, 0.0
      %v566 = vmax.f32 %v504, 0.0
      %v567 = vmax.f32 %v509, 0.0
      %v568 = vmax.f32 %v514, 0.0
      %v569 = vmax.f32 %v519, 0.0
      %v570 = vmax.f32 %v524, 0.0
      %v571 = vmax.f32 %v529, 0.0
      %v572 = vmax.f32 %v534, 0.0
      %v573 = vmax.f32 %v539, 0.0
      %vm574 = vcmask 130048
      %575 = vst.msk [vmem:[%s174] sm:$0xff] %vm574, %v542
      %576 = vst.msk [vmem:[%s174 + $0x8] sm:$0xff] %vm574, %v543
      %577 = vst.msk [vmem:[%s174 + $0x20] sm:$0xff] %vm574, %v544
      %578 = vst.msk [vmem:[%s174 + $0x28] sm:$0xff] %vm574, %v545
      %579 = vst.msk [vmem:[%s174 + $0x40] sm:$0xff] %vm574, %v546
      %580 = vst.msk [vmem:[%s174 + $0x48] sm:$0xff] %vm574, %v547
      %581 = vst.msk [vmem:[%s174 + $0x60] sm:$0xff] %vm574, %v548
      %582 = vst.msk [vmem:[%s174 + $0x68] sm:$0xff] %vm574, %v549
      %583 = vst.msk [vmem:[%s174 + $0x80] sm:$0xff] %vm574, %v550
      %584 = vst.msk [vmem:[%s174 + $0x88] sm:$0xff] %vm574, %v551
      %585 = vst.msk [vmem:[%s174 + $0xa0] sm:$0xff] %vm574, %v552
      %586 = vst.msk [vmem:[%s174 + $0xa8] sm:$0xff] %vm574, %v553
      %587 = vst.msk [vmem:[%s174 + $0xc0] sm:$0xff] %vm574, %v554
      %588 = vst.msk [vmem:[%s174 + $0xc8] sm:$0xff] %vm574, %v555
      %589 = vst.msk [vmem:[%s174 + $0xe0] sm:$0xff] %vm574, %v556
      %590 = vst.msk [vmem:[%s174 + $0xe8] sm:$0xff] %vm574, %v557
      %591 = vst.msk [vmem:[%s174 + $0x100] sm:$0xff] %vm574, %v558
      %592 = vst.msk [vmem:[%s174 + $0x108] sm:$0xff] %vm574, %v559
      %593 = vst.msk [vmem:[%s174 + $0x120] sm:$0xff] %vm574, %v560
      %594 = vst.msk [vmem:[%s174 + $0x128] sm:$0xff] %vm574, %v561
      %595 = vst.msk [vmem:[%s174 + $0x140] sm:$0xff] %vm574, %v562
      %596 = vst.msk [vmem:[%s174 + $0x148] sm:$0xff] %vm574, %v563
      %597 = vst.msk [vmem:[%s174 + $0x160] sm:$0xff] %vm574, %v564
      %598 = vst.msk [vmem:[%s174 + $0x168] sm:$0xff] %vm574, %v565
      %599 = vst.msk [vmem:[%s174 + $0x180] sm:$0xff] %vm574, %v566
      %600 = vst.msk [vmem:[%s174 + $0x188] sm:$0xff] %vm574, %v567
      %601 = vst.msk [vmem:[%s174 + $0x1a0] sm:$0xff] %vm574, %v568
      %602 = vst.msk [vmem:[%s174 + $0x1a8] sm:$0xff] %vm574, %v569
      %603 = vst.msk [vmem:[%s174 + $0x1c0] sm:$0xff] %vm574, %v570
      %604 = vst.msk [vmem:[%s174 + $0x1c8] sm:$0xff] %vm574, %v571
      %605 = vst.msk [vmem:[%s174 + $0x1e0] sm:$0xff] %vm574, %v572
      %606 = vst.msk [vmem:[%s174 + $0x1e8] sm:$0xff] %vm574, %v573
      %s607 = scalar_lea.vmem %s1, 4
      %v608 = vld [vmem:[%s607] sm:$0xf]
      %v610 = vsel %vm313, %v608, 0
      %612 = vmatprep.subr.mxu0 0.0
      %613 = vmatpush1.msra.mxu0 %v610
      %614 = vmatprep.subr.mxu0 0.0
      %615 = vmatpush1.msra.mxu0 0.0
      %616 = vmatprep.subr.mxu0 0.0
      %617 = vmatpush1.msra.mxu0 0.0
      %618 = vmatprep.subr.mxu0 0.0
      %619 = vmatpush1.msra.mxu0 0.0
      %620 = vmatprep.subr.mxu0 0.0
      %621 = vmatpush1.msra.mxu0 0.0
      %622 = vmatprep.subr.mxu0 0.0
      %623 = vmatpush1.msra.mxu0 0.0
      %624 = vmatprep.subr.mxu0 0.0
      %625 = vmatpush1.msra.mxu0 0.0
      %626 = vmatprep.subr.mxu0 0.0
      %627 = vmatpush1.msra.mxu0 0.0
      %628 = vmatprep.subr.mxu0 0.0
      %629 = vmatpush1.msra.mxu0 0.0
      %630 = vmatprep.subr.mxu0 0.0
      %631 = vmatpush1.msra.mxu0 0.0
      %632 = vmatprep.subr.mxu0 0.0
      %633 = vmatpush1.msra.mxu0 0.0
      %634 = vmatprep.subr.mxu0 0.0
      %635 = vmatpush1.msra.mxu0 0.0
      %636 = vmatprep.subr.mxu0 0.0
      %637 = vmatpush1.msra.mxu0 0.0
      %638 = vmatprep.subr.mxu0 0.0
      %639 = vmatpush1.msra.mxu0 0.0
      %640 = vmatprep.subr.mxu0 0.0
      %641 = vmatpush1.msra.mxu0 0.0
      %642 = vmatprep.subr.mxu0 0.0
      %643 = vmatpush1.msra.mxu0 0.0
      %644 = vmatprep.subr.mxu0 0.0
      %645 = vmatpush1.msra.mxu0 0.0
      %646 = vmatprep.subr.mxu0 0.0
      %647 = vmatpush1.msra.mxu0 0.0
      %648 = vmatprep.subr.mxu0 0.0
      %649 = vmatpush1.msra.mxu0 0.0
      %650 = vmatprep.subr.mxu0 0.0
      %651 = vmatpush1.msra.mxu0 0.0
      %652 = vmatprep.subr.mxu0 0.0
      %653 = vmatpush1.msra.mxu0 0.0
      %654 = vmatprep.subr.mxu0 0.0
      %655 = vmatpush1.msra.mxu0 0.0
      %656 = vmatprep.subr.mxu0 0.0
      %657 = vmatpush1.msra.mxu0 0.0
      %658 = vmatprep.subr.mxu0 0.0
      %659 = vmatpush1.msra.mxu0 0.0
      %660 = vmatprep.subr.mxu0 0.0
      %661 = vmatpush1.msra.mxu0 0.0
      %662 = vmatprep.subr.mxu0 0.0
      %663 = vmatpush1.msra.mxu0 0.0
      %664 = vmatprep.subr.mxu0 0.0
      %665 = vmatpush1.msra.mxu0 0.0
      %666 = vmatprep.subr.mxu0 0.0
      %667 = vmatpush1.msra.mxu0 0.0
      %668 = vmatprep.subr.mxu0 0.0
      %669 = vmatpush1.msra.mxu0 0.0
      %670 = vmatprep.subr.mxu0 0.0
      %671 = vmatpush1.msra.mxu0 0.0
      %672 = vmatprep.subr.mxu0 0.0
      %673 = vmatpush1.msra.mxu0 0.0
      %674 = vmatprep.subr.mxu0 0.0
      %675 = vmatpush1.msra.mxu0 0.0
      %676 = vmatprep.mubr.f32.mxu0 0.0
      %677 = vmatmul.mubr.f32.gmra.mrb[0].mxu0 %v218
      %v678 = vpop.f32.mrb[0].mxu0
      %v679 = vadd.f32 %v214, %v678
      %v680 = vpop.f32.mrb[0].mxu0
      %681 = vmatprep.mubr.f32.mxu0 0.0
      %682 = vmatmul.mubr.f32.gmra.mrb[0].mxu0 %v221
      %v683 = vpop.f32.mrb[0].mxu0
      %v684 = vadd.f32 %v214, %v683
      %v685 = vpop.f32.mrb[0].mxu0
      %686 = vmatprep.mubr.f32.mxu0 0.0
      %687 = vmatmul.mubr.f32.gmra.mrb[0].mxu0 %v224
      %v688 = vpop.f32.mrb[0].mxu0
      %v689 = vadd.f32 %v214, %v688
      %v690 = vpop.f32.mrb[0].mxu0
      %691 = vmatprep.mubr.f32.mxu0 0.0
      %692 = vmatmul.mubr.f32.gmra.mrb[0].mxu0 %v227
      %v693 = vpop.f32.mrb[0].mxu0
      %v694 = vadd.f32 %v214, %v693
      %v695 = vpop.f32.mrb[0].mxu0
      %696 = vmatprep.mubr.f32.mxu0 0.0
      %697 = vmatmul.mubr.f32.gmra.mrb[0].mxu0 %v230
      %v698 = vpop.f32.mrb[0].mxu0
      %v699 = vadd.f32 %v214, %v698
      %v700 = vpop.f32.mrb[0].mxu0
      %701 = vmatprep.mubr.f32.mxu0 0.0
      %702 = vmatmul.mubr.f32.gmra.mrb[0].mxu0 %v233
      %v703 = vpop.f32.mrb[0].mxu0
      %v704 = vadd.f32 %v214, %v703
      %v705 = vpop.f32.mrb[0].mxu0
      %706 = vmatprep.mubr.f32.mxu0 0.0
      %707 = vmatmul.mubr.f32.gmra.mrb[0].mxu0 %v236
      %v708 = vpop.f32.mrb[0].mxu0
      %v709 = vadd.f32 %v214, %v708
      %v710 = vpop.f32.mrb[0].mxu0
      %711 = vmatprep.mubr.f32.mxu0 0.0
      %712 = vmatmul.mubr.f32.gmra.mrb[0].mxu0 %v239
      %v713 = vpop.f32.mrb[0].mxu0
      %v714 = vadd.f32 %v214, %v713
      %v715 = vpop.f32.mrb[0].mxu0
      %716 = vmatprep.mubr.f32.mxu0 0.0
      %717 = vmatmul.mubr.f32.gmra.mrb[0].mxu0 %v242
      %v718 = vpop.f32.mrb[0].mxu0
      %v719 = vadd.f32 %v214, %v718
      %v720 = vpop.f32.mrb[0].mxu0
      %721 = vmatprep.mubr.f32.mxu0 0.0
      %722 = vmatmul.mubr.f32.gmra.mrb[0].mxu0 %v245
      %v723 = vpop.f32.mrb[0].mxu0
      %v724 = vadd.f32 %v214, %v723
      %v725 = vpop.f32.mrb[0].mxu0
      %726 = vmatprep.mubr.f32.mxu0 0.0
      %727 = vmatmul.mubr.f32.gmra.mrb[0].mxu0 %v248
      %v728 = vpop.f32.mrb[0].mxu0
      %v729 = vadd.f32 %v214, %v728
      %v730 = vpop.f32.mrb[0].mxu0
      %731 = vmatprep.mubr.f32.mxu0 0.0
      %732 = vmatmul.mubr.f32.gmra.mrb[0].mxu0 %v251
      %v733 = vpop.f32.mrb[0].mxu0
      %v734 = vadd.f32 %v214, %v733
      %v735 = vpop.f32.mrb[0].mxu0
      %736 = vmatprep.mubr.f32.mxu0 0.0
      %737 = vmatmul.mubr.f32.gmra.mrb[0].mxu0 %v254
      %v738 = vpop.f32.mrb[0].mxu0
      %v739 = vadd.f32 %v214, %v738
      %v740 = vpop.f32.mrb[0].mxu0
      %741 = vmatprep.mubr.f32.mxu0 0.0
      %742 = vmatmul.mubr.f32.gmra.mrb[0].mxu0 %v257
      %v743 = vpop.f32.mrb[0].mxu0
      %v744 = vadd.f32 %v214, %v743
      %v745 = vpop.f32.mrb[0].mxu0
      %746 = vmatprep.mubr.f32.mxu0 0.0
      %747 = vmatmul.mubr.f32.gmra.mrb[0].mxu0 %v260
      %v748 = vpop.f32.mrb[0].mxu0
      %v749 = vadd.f32 %v214, %v748
      %v750 = vpop.f32.mrb[0].mxu0
      %751 = vmatprep.mubr.f32.mxu0 0.0
      %752 = vmatmul.mubr.f32.gmra.mrb[0].mxu0 %v263
      %v753 = vpop.f32.mrb[0].mxu0
      %v754 = vadd.f32 %v214, %v753
      %v755 = vpop.f32.mrb[0].mxu0
      %756 = vmatprep.mubr.f32.mxu0 0.0
      %757 = vmatmul.mubr.f32.gmra.mrb[0].mxu0 %v266
      %v758 = vpop.f32.mrb[0].mxu0
      %v759 = vadd.f32 %v214, %v758
      %v760 = vpop.f32.mrb[0].mxu0
      %761 = vmatprep.mubr.f32.mxu0 0.0
      %762 = vmatmul.mubr.f32.gmra.mrb[0].mxu0 %v269
      %v763 = vpop.f32.mrb[0].mxu0
      %v764 = vadd.f32 %v214, %v763
      %v765 = vpop.f32.mrb[0].mxu0
      %766 = vmatprep.mubr.f32.mxu0 0.0
      %767 = vmatmul.mubr.f32.gmra.mrb[0].mxu0 %v272
      %v768 = vpop.f32.mrb[0].mxu0
      %v769 = vadd.f32 %v214, %v768
      %v770 = vpop.f32.mrb[0].mxu0
      %771 = vmatprep.mubr.f32.mxu0 0.0
      %772 = vmatmul.mubr.f32.gmra.mrb[0].mxu0 %v275
      %v773 = vpop.f32.mrb[0].mxu0
      %v774 = vadd.f32 %v214, %v773
      %v775 = vpop.f32.mrb[0].mxu0
      %776 = vmatprep.mubr.f32.mxu0 0.0
      %777 = vmatmul.mubr.f32.gmra.mrb[0].mxu0 %v278
      %v778 = vpop.f32.mrb[0].mxu0
      %v779 = vadd.f32 %v214, %v778
      %v780 = vpop.f32.mrb[0].mxu0
      %781 = vmatprep.mubr.f32.mxu0 0.0
      %782 = vmatmul.mubr.f32.gmra.mrb[0].mxu0 %v281
      %v783 = vpop.f32.mrb[0].mxu0
      %v784 = vadd.f32 %v214, %v783
      %v785 = vpop.f32.mrb[0].mxu0
      %786 = vmatprep.mubr.f32.mxu0 0.0
      %787 = vmatmul.mubr.f32.gmra.mrb[0].mxu0 %v284
      %v788 = vpop.f32.mrb[0].mxu0
      %v789 = vadd.f32 %v214, %v788
      %v790 = vpop.f32.mrb[0].mxu0
      %791 = vmatprep.mubr.f32.mxu0 0.0
      %792 = vmatmul.mubr.f32.gmra.mrb[0].mxu0 %v287
      %v793 = vpop.f32.mrb[0].mxu0
      %v794 = vadd.f32 %v214, %v793
      %v795 = vpop.f32.mrb[0].mxu0
      %796 = vmatprep.mubr.f32.mxu0 0.0
      %797 = vmatmul.mubr.f32.gmra.mrb[0].mxu0 %v290
      %v798 = vpop.f32.mrb[0].mxu0
      %v799 = vadd.f32 %v214, %v798
      %v800 = vpop.f32.mrb[0].mxu0
      %801 = vmatprep.mubr.f32.mxu0 0.0
      %802 = vmatmul.mubr.f32.gmra.mrb[0].mxu0 %v293
      %v803 = vpop.f32.mrb[0].mxu0
      %v804 = vadd.f32 %v214, %v803
      %v805 = vpop.f32.mrb[0].mxu0
      %806 = vmatprep.mubr.f32.mxu0 0.0
      %807 = vmatmul.mubr.f32.gmra.mrb[0].mxu0 %v296
      %v808 = vpop.f32.mrb[0].mxu0
      %v809 = vadd.f32 %v214, %v808
      %v810 = vpop.f32.mrb[0].mxu0
      %811 = vmatprep.mubr.f32.mxu0 0.0
      %812 = vmatmul.mubr.f32.gmra.mrb[0].mxu0 %v299
      %v813 = vpop.f32.mrb[0].mxu0
      %v814 = vadd.f32 %v214, %v813
      %v815 = vpop.f32.mrb[0].mxu0
      %816 = vmatprep.mubr.f32.mxu0 0.0
      %817 = vmatmul.mubr.f32.gmra.mrb[0].mxu0 %v302
      %v818 = vpop.f32.mrb[0].mxu0
      %v819 = vadd.f32 %v214, %v818
      %v820 = vpop.f32.mrb[0].mxu0
      %821 = vmatprep.mubr.f32.mxu0 0.0
      %822 = vmatmul.mubr.f32.gmra.mrb[0].mxu0 %v305
      %v823 = vpop.f32.mrb[0].mxu0
      %v824 = vadd.f32 %v214, %v823
      %v825 = vpop.f32.mrb[0].mxu0
      %826 = vmatprep.mubr.f32.mxu0 0.0
      %827 = vmatmul.mubr.f32.gmra.mrb[0].mxu0 %v308
      %v828 = vpop.f32.mrb[0].mxu0
      %v829 = vadd.f32 %v214, %v828
      %v830 = vpop.f32.mrb[0].mxu0
      %831 = vmatprep.mubr.f32.mxu0 0.0
      %832 = vmatmul.mubr.f32.gmra.mrb[0].mxu0 %v311
      %v833 = vpop.f32.mrb[0].mxu0
      %v834 = vadd.f32 %v214, %v833
      %v835 = vpop.f32.mrb[0].mxu0
      %836 = vdwg.mxu0
      %v837 = vmax.f32 %v679, 0.0
      %v838 = vmax.f32 %v684, 0.0
      %v839 = vmax.f32 %v689, 0.0
      %v840 = vmax.f32 %v694, 0.0
      %v841 = vmax.f32 %v699, 0.0
      %v842 = vmax.f32 %v704, 0.0
      %v843 = vmax.f32 %v709, 0.0
      %v844 = vmax.f32 %v714, 0.0
      %v845 = vmax.f32 %v719, 0.0
      %v846 = vmax.f32 %v724, 0.0
      %v847 = vmax.f32 %v729, 0.0
      %v848 = vmax.f32 %v734, 0.0
      %v849 = vmax.f32 %v739, 0.0
      %v850 = vmax.f32 %v744, 0.0
      %v851 = vmax.f32 %v749, 0.0
      %v852 = vmax.f32 %v754, 0.0
      %v853 = vmax.f32 %v759, 0.0
      %v854 = vmax.f32 %v764, 0.0
      %v855 = vmax.f32 %v769, 0.0
      %v856 = vmax.f32 %v774, 0.0
      %v857 = vmax.f32 %v779, 0.0
      %v858 = vmax.f32 %v784, 0.0
      %v859 = vmax.f32 %v789, 0.0
      %v860 = vmax.f32 %v794, 0.0
      %v861 = vmax.f32 %v799, 0.0
      %v862 = vmax.f32 %v804, 0.0
      %v863 = vmax.f32 %v809, 0.0
      %v864 = vmax.f32 %v814, 0.0
      %v865 = vmax.f32 %v819, 0.0
      %v866 = vmax.f32 %v824, 0.0
      %v867 = vmax.f32 %v829, 0.0
      %v868 = vmax.f32 %v834, 0.0
      %s869 = scalar_lea.vmem %s174, 16
      %870 = vst.msk [vmem:[%s869] sm:$0xff] %vm574, %v837
      %871 = vst.msk [vmem:[%s869 + $0x8] sm:$0xff] %vm574, %v838
      %872 = vst.msk [vmem:[%s869 + $0x20] sm:$0xff] %vm574, %v839
      %873 = vst.msk [vmem:[%s869 + $0x28] sm:$0xff] %vm574, %v840
      %874 = vst.msk [vmem:[%s869 + $0x40] sm:$0xff] %vm574, %v841
      %875 = vst.msk [vmem:[%s869 + $0x48] sm:$0xff] %vm574, %v842
      %876 = vst.msk [vmem:[%s869 + $0x60] sm:$0xff] %vm574, %v843
      %877 = vst.msk [vmem:[%s869 + $0x68] sm:$0xff] %vm574, %v844
      %878 = vst.msk [vmem:[%s869 + $0x80] sm:$0xff] %vm574, %v845
      %879 = vst.msk [vmem:[%s869 + $0x88] sm:$0xff] %vm574, %v846
      %880 = vst.msk [vmem:[%s869 + $0xa0] sm:$0xff] %vm574, %v847
      %881 = vst.msk [vmem:[%s869 + $0xa8] sm:$0xff] %vm574, %v848
      %882 = vst.msk [vmem:[%s869 + $0xc0] sm:$0xff] %vm574, %v849
      %883 = vst.msk [vmem:[%s869 + $0xc8] sm:$0xff] %vm574, %v850
      %884 = vst.msk [vmem:[%s869 + $0xe0] sm:$0xff] %vm574, %v851
      %885 = vst.msk [vmem:[%s869 + $0xe8] sm:$0xff] %vm574, %v852
      %886 = vst.msk [vmem:[%s869 + $0x100] sm:$0xff] %vm574, %v853
      %887 = vst.msk [vmem:[%s869 + $0x108] sm:$0xff] %vm574, %v854
      %888 = vst.msk [vmem:[%s869 + $0x120] sm:$0xff] %vm574, %v855
      %889 = vst.msk [vmem:[%s869 + $0x128] sm:$0xff] %vm574, %v856
      %890 = vst.msk [vmem:[%s869 + $0x140] sm:$0xff] %vm574, %v857
      %891 = vst.msk [vmem:[%s869 + $0x148] sm:$0xff] %vm574, %v858
      %892 = vst.msk [vmem:[%s869 + $0x160] sm:$0xff] %vm574, %v859
      %893 = vst.msk [vmem:[%s869 + $0x168] sm:$0xff] %vm574, %v860
      %894 = vst.msk [vmem:[%s869 + $0x180] sm:$0xff] %vm574, %v861
      %895 = vst.msk [vmem:[%s869 + $0x188] sm:$0xff] %vm574, %v862
      %896 = vst.msk [vmem:[%s869 + $0x1a0] sm:$0xff] %vm574, %v863
      %897 = vst.msk [vmem:[%s869 + $0x1a8] sm:$0xff] %vm574, %v864
      %898 = vst.msk [vmem:[%s869 + $0x1c0] sm:$0xff] %vm574, %v865
      %899 = vst.msk [vmem:[%s869 + $0x1c8] sm:$0xff] %vm574, %v866
      %900 = vst.msk [vmem:[%s869 + $0x1e0] sm:$0xff] %vm574, %v867
      %901 = vst.msk [vmem:[%s869 + $0x1e8] sm:$0xff] %vm574, %v868
      %s902 = smul.u32 16, %s14
      %p903 = scmp.lt.s32.totalorder %s902, 31
      %s904 = scalar_select %p903, %s902, 31
      %s905 = smul.addr %s904, 4
      %s906 = smul.addr %s905, 8
      %s907 = scalar_lea.vmem %s3, %s906
      // Predicated region
      $region33: #{tpu_custom_call.1} parent=31 // pred_check
        %p908 = pneg %p100
      $region34: #{tpu_custom_call.1} parent=31 // pred_check_branch
        %910 = sbr.rel (%p908) target = $region36
      $region35: #{tpu_custom_call.1} parent=31 // pred_region
        %s911 = smul.u32 16, %s14
      $region36: #{tpu_custom_call.1} parent=31 // pred_fallthru
        _
    $region32: #{tpu_custom_call.1} parent=5 // pred_fallthru
      _
    %p912 = scmp.le.s32.totalorder 2, %s9
    // Predicated region
    $region37: #{tpu_custom_call.1} parent=5 // pred_check
      %p913 = pneg %p912
    $region38: #{tpu_custom_call.1} parent=5 // pred_check_branch
      %915 = sbr.rel (%p913) target = $region40
    $region39: #{tpu_custom_call.1} parent=5 // pred_region
      %s916 = ssub.s32 %s9, 2
      // Predicated region
      $region41: #{tpu_custom_call.1} parent=39 // pred_check
        %p917 = pneg %p106
      $region42: #{tpu_custom_call.1} parent=39 // pred_check_branch
        %919 = sbr.rel (%p917) target = $region44
      $region43: #{tpu_custom_call.1} parent=39 // pred_region
        %s920 = smul.u32 16, %s15
        %p921 = scmp.lt.s32.totalorder %s920, 31
        %s922 = scalar_select %p921, %s920, 31
        %s923 = smul.addr %s922, 4
        %s924 = smul.addr %s923, 8
        %s925 = scalar_lea.vmem %s3, %s924
      $region44: #{tpu_custom_call.1} parent=39 // pred_fallthru
        _
    $region40: #{tpu_custom_call.1} parent=5 // pred_fallthru
      _
  $region6: #{tpu_custom_call.1} parent=0 // loop_footer
    %s13 = sadd.s32 1, %s9
  $region7: #{tpu_custom_call.1} parent=0 // loop_footer_branch
    %8 = sbr.rel target = $region3
  $region8: #{tpu_custom_call.1} parent=0 // loop_exit
    _

</llo_original>
